<compile_context>
chip_gen: v7x
topology: tpu7x:2x2x1
jax: 0.10.0
libtpu: 0.0.40
codegen_flags: <defaults>
</compile_context>

<pallas_src>
import jax
import jax.numpy as jnp
from jax.experimental import pallas as pl
from jax.experimental.pallas import tpu as pltpu

LANE = 128
SUB = 8


def _round_up(x, m):
    return ((x + m - 1) // m) * m


def uto_global(u, coloring, batch, n_batch, num_graphs, w1, b1, w2, b2,
               *, tile_n=None, vmem_limit_bytes=32 * 1024 * 1024):
    """Forward pass of UtoGlobal (pooling method='mean').

    u        : (N, C, F) float (f32, or bf16 to halve HBM traffic)
    coloring : (N, 1) or (N,) int  per-node color index in [0, C)
    batch    : (N,) int            graph id per node in [0, num_graphs)
    n_batch  : (N, 1) float        per-node graph size (as in batch_info)
    w1, w2   : (O, F) float        nn.Linear weights (PyTorch layout)
    b1, b2   : (O,) float          nn.Linear biases
    returns  : (num_graphs, O) float32
    """
    N, C, F = map(int, u.shape)
    O = int(w1.shape[0])
    G = int(num_graphs)
    f32 = jnp.float32

    CF = C * F
    O_pad = _round_up(max(O, 1), LANE)
    G_pad = _round_up(max(G, 1), SUB)

    # --- N tile size: biggest that fits a VMEM budget, derived from PADDED shapes.
    if tile_n is None:
        itemsize = jnp.dtype(u.dtype).itemsize
        u_row = _round_up(CF, LANE) * itemsize        # flat u tile bytes per node row
        aux_row = 2 * LANE * 4 + SUB * 4              # (Tn,1) coloring + inv_nb (lane-padded) + (1,Tn) batch
        temp_row = 4 * _round_up(F, LANE) * 4         # ext/csum/mean f32 temporaries (single-buffered)
        budget = 16 * 1024 * 1024                     # streaming (x2 dbl-buf) + temporaries
        tile_n = budget // (2 * (u_row + aux_row) + temp_row)
        tile_n = (tile_n // LANE) * LANE
        tile_n = int(max(LANE, min(2048, tile_n)))    # cap 2048: fits v7x 64 MiB; >=512 keeps roofline
    tile_n = int(min(tile_n, max(LANE, _round_up(N, LANE))))
    n_tiles = int(pl.cdiv(N, tile_n))
    N_pad = n_tiles * tile_n                          # aux arrays only; u itself is NOT padded
    ragged = (N % tile_n) != 0

    # --- operand prep (u: free contiguous reshape, no HBM copy / pad).
    u_flat = u.reshape(N, CF)

    coloring_p = jnp.pad(jnp.asarray(coloring, jnp.int32).reshape(N, 1),
                         ((0, N_pad - N), (0, 0)))
    batch_i = jnp.asarray(batch, jnp.int32).reshape(N)
    # padded nodes get graph id G_pad -> matches no accumulator row
    batch_p = jnp.pad(batch_i.reshape(1, N), ((0, 0), (0, N_pad - N)),
                      constant_values=G_pad)
    n_batch_f = jnp.asarray(n_batch, f32).reshape(N, 1)
    inv_nb = jnp.where(n_batch_f > 0, 1.0 / n_batch_f, 0.0)
    inv_nb_p = jnp.pad(inv_nb, ((0, N_pad - N), (0, 0)))

    # per-graph inverse counts (safe divide: empty graphs -> 0, not NaN)
    counts = jnp.zeros((G,), f32).at[batch_i].add(1.0)
    inv_counts = jnp.where(counts > 0, 1.0 / counts, 0.0)
    inv_counts_p = jnp.pad(inv_counts, (0, G_pad - G)).reshape(G_pad, 1)

    # fold both linears: out = mbt @ (w1-w2)^T + pooled_mean @ w2^T + (b1+b2)
    w1 = jnp.asarray(w1, f32)
    w2 = jnp.asarray(w2, f32)
    wa = jnp.pad((w1 - w2).T, ((0, 0), (0, O_pad - O)))       # (F, O_pad)
    wb = jnp.pad(w2.T, ((0, 0), (0, O_pad - O)))              # (F, O_pad)
    b = jnp.pad((jnp.asarray(b1, f32) + jnp.asarray(b2, f32)).reshape(1, O),
                ((0, 0), (0, O_pad - O)))                     # (1, O_pad)

    def kernel(u_ref, col_ref, batch_ref, inv_nb_ref, inv_cnt_ref,
               wa_ref, wb_ref, b_ref, out_ref, acc_ext_ref, acc_mean_ref):
        step = pl.program_id(0)
        nsteps = pl.num_programs(0)

        @pl.when(step == 0)
        def _init():
            acc_ext_ref[...] = jnp.zeros_like(acc_ext_ref)
            acc_mean_ref[...] = jnp.zeros_like(acc_mean_ref)

        col = col_ref[...]                                      # (Tn, 1) int32

        # extended_diag = u[n, coloring[n], :]  (C-unrolled lane-dense select)
        # csum          = sum_c u[:, c, :]
        ext = jnp.zeros((tile_n, F), jnp.float32)
        csum = jnp.zeros((tile_n, F), jnp.float32)
        for c in range(C):                                      # C is small & static
            uc = u_ref[:, c * F:(c + 1) * F].astype(jnp.float32)  # static lane slice
            ext = ext + jnp.where(col == c, uc, 0.0)
            csum = csum + uc
        mean_nodes = csum * inv_nb_ref[...]                     # (Tn, F) * (Tn, 1)

        if ragged:
            # last u tile reads past N: those rows hold garbage -> zero them
            row = step * tile_n + jax.lax.broadcasted_iota(jnp.int32, (tile_n, 1), 0)
            valid = row < N
            ext = jnp.where(valid, ext, 0.0)
            mean_nodes = jnp.where(valid, mean_nodes, 0.0)

        # Segment-sum both pooled quantities: (G_pad, Tn) @ (Tn, F), twice
        # (no (Tn, 2F) concat copy; MXU has plenty of slack).
        batch_row = batch_ref[...]                              # (1, Tn) int32
        iota_g = jax.lax.broadcasted_iota(jnp.int32, (G_pad, tile_n), 0)
        onehot = (iota_g == batch_row).astype(jnp.float32)      # (G_pad, Tn)
        acc_ext_ref[...] += jnp.dot(onehot, ext,
                                    preferred_element_type=jnp.float32)
        acc_mean_ref[...] += jnp.dot(onehot, mean_nodes,
                                     preferred_element_type=jnp.float32)

        @pl.when(step == nsteps - 1)
        def _finalize():
            inv_cnt = inv_cnt_ref[...]                          # (G_pad, 1)
            mbt = acc_ext_ref[...] * inv_cnt                    # mean_batch_trace
            pm = acc_mean_ref[...] * inv_cnt                    # pooled mean
            out = jnp.dot(mbt, wa_ref[...], preferred_element_type=jnp.float32)
            out = out + jnp.dot(pm, wb_ref[...], preferred_element_type=jnp.float32)
            out_ref[...] = (out + b_ref[...]).astype(out_ref.dtype)

    out_padded = pl.pallas_call(
        kernel,
        out_shape=jax.ShapeDtypeStruct((G_pad, O_pad), f32),
        grid_spec=pltpu.PrefetchScalarGridSpec(
            num_scalar_prefetch=0,
            grid=(n_tiles,),
            in_specs=[
                pl.BlockSpec((tile_n, CF), lambda i: (i, 0)),   # u (flat, unpadded)
                pl.BlockSpec((tile_n, 1), lambda i: (i, 0)),    # coloring
                pl.BlockSpec((1, tile_n), lambda i: (0, i)),    # batch ids (lane-major)
                pl.BlockSpec((tile_n, 1), lambda i: (i, 0)),    # 1 / n_batch
                pl.BlockSpec((G_pad, 1), lambda i: (0, 0)),     # 1 / counts
                pl.BlockSpec((F, O_pad), lambda i: (0, 0)),     # (w1 - w2)^T
                pl.BlockSpec((F, O_pad), lambda i: (0, 0)),     # w2^T
                pl.BlockSpec((1, O_pad), lambda i: (0, 0)),     # b1 + b2
            ],
            out_specs=pl.BlockSpec((G_pad, O_pad), lambda i: (0, 0)),
            scratch_shapes=[pltpu.VMEM((G_pad, F), jnp.float32),
                            pltpu.VMEM((G_pad, F), jnp.float32)],
        ),
        compiler_params=pltpu.CompilerParams(
            dimension_semantics=("arbitrary",),                 # N is a reduction axis
            vmem_limit_bytes=vmem_limit_bytes,
        ),
    )(u_flat, coloring_p, batch_p, inv_nb_p, inv_counts_p, wa, wb, b)

    return out_padded[:G, :O]


def uto_global_ref(u, coloring, batch, n_batch, num_graphs, w1, b1, w2, b2):
    """Pure-JAX reference mirroring the PyTorch forward (method='mean')."""
    N, C, F = u.shape
    col = coloring[:, 0]
    extended_diag = u[jnp.arange(N), col, :]                               # (N, F)
    onehot_g = (batch[None, :] == jnp.arange(num_graphs)[:, None]).astype(jnp.float32)
    counts = onehot_g.sum(axis=1, keepdims=True)
    mean_batch_trace = (onehot_g @ extended_diag) / counts
    mean = jnp.sum(u / n_batch[:, :, None], axis=1)                        # (N, F)
    batch_sum = (onehot_g @ mean) / counts - mean_batch_trace
    out1 = mean_batch_trace @ w1.T + b1
    out2 = batch_sum @ w2.T + b2
    return out1 + out2


if __name__ == "__main__":
    key = jax.random.PRNGKey(0)
    N, C, F, O, G = 8, 4, 32, 16, 2        # nodes, colors, in_feat, out_feat, graphs

    k_u, k_col, k_w1, k_b1, k_w2, k_b2 = jax.random.split(key, 6)
    u = jax.random.normal(k_u, (N, C, F), dtype=jnp.float32)
    coloring = jax.random.randint(k_col, (N, 1), 0, C, dtype=jnp.int32)
    # uneven graph sizes to exercise the mean pooling
    batch = jnp.array([0, 0, 0, 1, 1, 1, 1, 1], dtype=jnp.int32)
    n_batch = jnp.array([3, 3, 3, 5, 5, 5, 5, 5], dtype=jnp.float32).reshape(N, 1)

    # deterministic synthetic parameters (shapes of nn.Linear(in, out, bias))
    w1 = jax.random.normal(k_w1, (O, F), dtype=jnp.float32) / jnp.sqrt(F)
    b1 = 0.1 * jax.random.normal(k_b1, (O,), dtype=jnp.float32)
    w2 = jax.random.normal(k_w2, (O, F), dtype=jnp.float32) / jnp.sqrt(F)
    b2 = 0.1 * jax.random.normal(k_b2, (O,), dtype=jnp.float32)

    out = uto_global(u, coloring, batch, n_batch, G, w1, b1, w2, b2)
    out = jax.block_until_ready(out)

    ref = uto_global_ref(u, coloring, batch, n_batch, G, w1, b1, w2, b2)
    assert out.shape == (G, O)
    assert jnp.allclose(out, ref, atol=1e-4, rtol=1e-4), "mismatch vs reference"

    print("KERNEL_OK")
</pallas_src>

<mosaic_0001>
module attributes {stable_mosaic.version = 11 : i64} {
  func.func @kernel(%arg0: i32, %arg1: memref<128x128xf32, #tpu.memory_space<vmem>>, %arg2: memref<128x1xi32, #tpu.memory_space<vmem>>, %arg3: memref<1x128xi32, #tpu.memory_space<vmem>>, %arg4: memref<128x1xf32, #tpu.memory_space<vmem>>, %arg5: memref<8x1xf32, #tpu.memory_space<vmem>>, %arg6: memref<32x128xf32, #tpu.memory_space<vmem>>, %arg7: memref<32x128xf32, #tpu.memory_space<vmem>>, %arg8: memref<1x128xf32, #tpu.memory_space<vmem>>, %arg9: memref<8x128xf32, #tpu.memory_space<vmem>>, %arg10: memref<8x32xf32, #tpu.memory_space<vmem>>, %arg11: memref<8x32xf32, #tpu.memory_space<vmem>>) attributes {dimension_semantics = [#tpu.dimension_semantics<arbitrary>], iteration_bounds = array<i64: 1>, scalar_prefetch = 0 : i64, scratch_operands = 2 : i64, tpu.core_type = #tpu.core_type<tc>, window_params = [{transform_indices = @transform_0, window_bounds = array<i64: 128, 128>}, {transform_indices = @transform_1, window_bounds = array<i64: 128, 1>}, {transform_indices = @transform_2, window_bounds = array<i64: 1, 128>}, {transform_indices = @transform_3, window_bounds = array<i64: 128, 1>}, {pipeline_mode = #tpu.pipeline_mode<synchronous>, transform_indices = @transform_4, window_bounds = array<i64: 8, 1>}, {pipeline_mode = #tpu.pipeline_mode<synchronous>, transform_indices = @transform_5, window_bounds = array<i64: 32, 128>}, {pipeline_mode = #tpu.pipeline_mode<synchronous>, transform_indices = @transform_6, window_bounds = array<i64: 32, 128>}, {pipeline_mode = #tpu.pipeline_mode<synchronous>, transform_indices = @transform_7, window_bounds = array<i64: 1, 128>}, {pipeline_mode = #tpu.pipeline_mode<synchronous>, transform_indices = @transform_8, window_bounds = array<i64: 8, 128>}]} {
    %c0_i32 = arith.constant 0 : i32
    %0 = arith.cmpi eq, %arg0, %c0_i32 : i32
    %1 = arith.extui %0 : i1 to i32
    %c0_i32_0 = arith.constant 0 : i32
    %2 = arith.cmpi ne, %1, %c0_i32_0 : i32
    scf.if %2 {
      %cst_31 = arith.constant 0.000000e+00 : f32
      %76 = vector.broadcast %cst_31 : f32 to vector<8x32xf32>
      %c0_32 = arith.constant 0 : index
      %c0_33 = arith.constant 0 : index
      %77 = vector.load %arg10[%c0_32, %c0_33] : memref<8x32xf32, #tpu.memory_space<vmem>>, vector<8x32xf32>
      tpu.vector_store %arg10[%c0_32, %c0_33], %76 {strides = array<i32>} : memref<8x32xf32, #tpu.memory_space<vmem>>, vector<8x32xf32>,
      %cst_34 = arith.constant 0.000000e+00 : f32
      %78 = vector.broadcast %cst_34 : f32 to vector<8x32xf32>
      %c0_35 = arith.constant 0 : index
      %c0_36 = arith.constant 0 : index
      %79 = vector.load %arg11[%c0_35, %c0_36] : memref<8x32xf32, #tpu.memory_space<vmem>>, vector<8x32xf32>
      tpu.vector_store %arg11[%c0_35, %c0_36], %78 {strides = array<i32>} : memref<8x32xf32, #tpu.memory_space<vmem>>, vector<8x32xf32>,
    } else {
    }
    %c0 = arith.constant 0 : index
    %c0_1 = arith.constant 0 : index
    %3 = vector.load %arg2[%c0, %c0_1] : memref<128x1xi32, #tpu.memory_space<vmem>>, vector<128x1xi32>
    %cst = arith.constant 0.000000e+00 : f32
    %4 = vector.broadcast %cst : f32 to vector<128x32xf32>
    %cst_2 = arith.constant 0.000000e+00 : f32
    %5 = vector.broadcast %cst_2 : f32 to vector<128x32xf32>
    %c0_3 = arith.constant 0 : index
    %c0_4 = arith.constant 0 : index
    %6 = vector.load %arg1[%c0_3, %c0_4] : memref<128x128xf32, #tpu.memory_space<vmem>>, vector<128x32xf32>
    %c0_i32_5 = arith.constant 0 : i32
    %7 = vector.broadcast %c0_i32_5 : i32 to vector<128x1xi32>
    %8 = arith.cmpi eq, %3, %7 : vector<128x1xi32>
    %cst_6 = arith.constant 0.000000e+00 : f32
    %9 = vector.shape_cast %8 : vector<128x1xi1> to vector<128x1xi1>
    %10 = vector.broadcast %9 : vector<128x1xi1> to vector<128x32xi1>
    %11 = vector.broadcast %cst_6 : f32 to vector<128x32xf32>
    %12 = arith.select %10, %6, %11 : vector<128x32xi1>, vector<128x32xf32>
    %13 = arith.addf %4, %12 : vector<128x32xf32>
    %14 = arith.addf %5, %6 : vector<128x32xf32>
    %c0_7 = arith.constant 0 : index
    %c32 = arith.constant 32 : index
    %15 = vector.load %arg1[%c0_7, %c32] : memref<128x128xf32, #tpu.memory_space<vmem>>, vector<128x32xf32>
    %c1_i32 = arith.constant 1 : i32
    %16 = vector.broadcast %c1_i32 : i32 to vector<128x1xi32>
    %17 = arith.cmpi eq, %3, %16 : vector<128x1xi32>
    %cst_8 = arith.constant 0.000000e+00 : f32
    %18 = vector.shape_cast %17 : vector<128x1xi1> to vector<128x1xi1>
    %19 = vector.broadcast %18 : vector<128x1xi1> to vector<128x32xi1>
    %20 = vector.broadcast %cst_8 : f32 to vector<128x32xf32>
    %21 = arith.select %19, %15, %20 : vector<128x32xi1>, vector<128x32xf32>
    %22 = arith.addf %13, %21 : vector<128x32xf32>
    %23 = arith.addf %14, %15 : vector<128x32xf32>
    %c0_9 = arith.constant 0 : index
    %c64 = arith.constant 64 : index
    %24 = vector.load %arg1[%c0_9, %c64] : memref<128x128xf32, #tpu.memory_space<vmem>>, vector<128x32xf32>
    %c2_i32 = arith.constant 2 : i32
    %25 = vector.broadcast %c2_i32 : i32 to vector<128x1xi32>
    %26 = arith.cmpi eq, %3, %25 : vector<128x1xi32>
    %cst_10 = arith.constant 0.000000e+00 : f32
    %27 = vector.shape_cast %26 : vector<128x1xi1> to vector<128x1xi1>
    %28 = vector.broadcast %27 : vector<128x1xi1> to vector<128x32xi1>
    %29 = vector.broadcast %cst_10 : f32 to vector<128x32xf32>
    %30 = arith.select %28, %24, %29 : vector<128x32xi1>, vector<128x32xf32>
    %31 = arith.addf %22, %30 : vector<128x32xf32>
    %32 = arith.addf %23, %24 : vector<128x32xf32>
    %c0_11 = arith.constant 0 : index
    %c96 = arith.constant 96 : index
    %33 = vector.load %arg1[%c0_11, %c96] : memref<128x128xf32, #tpu.memory_space<vmem>>, vector<128x32xf32>
    %c3_i32 = arith.constant 3 : i32
    %34 = vector.broadcast %c3_i32 : i32 to vector<128x1xi32>
    %35 = arith.cmpi eq, %3, %34 : vector<128x1xi32>
    %cst_12 = arith.constant 0.000000e+00 : f32
    %36 = vector.shape_cast %35 : vector<128x1xi1> to vector<128x1xi1>
    %37 = vector.broadcast %36 : vector<128x1xi1> to vector<128x32xi1>
    %38 = vector.broadcast %cst_12 : f32 to vector<128x32xf32>
    %39 = arith.select %37, %33, %38 : vector<128x32xi1>, vector<128x32xf32>
    %40 = arith.addf %31, %39 : vector<128x32xf32>
    %41 = arith.addf %32, %33 : vector<128x32xf32>
    %c0_13 = arith.constant 0 : index
    %c0_14 = arith.constant 0 : index
    %42 = vector.load %arg4[%c0_13, %c0_14] : memref<128x1xf32, #tpu.memory_space<vmem>>, vector<128x1xf32>
    %43 = vector.broadcast %42 : vector<128x1xf32> to vector<128x32xf32>
    %44 = arith.mulf %41, %43 : vector<128x32xf32>
    %c128_i32 = arith.constant 128 : i32
    %45 = arith.muli %arg0, %c128_i32 : i32
    %46 = tpu.iota {dimensions = array<i32: 0>} : vector<128x1xi32>
    %47 = vector.broadcast %45 : i32 to vector<128x1xi32>
    %48 = arith.addi %47, %46 : vector<128x1xi32>
    %c8_i32 = arith.constant 8 : i32
    %49 = vector.broadcast %c8_i32 : i32 to vector<128x1xi32>
    %50 = arith.cmpi slt, %48, %49 : vector<128x1xi32>
    %cst_15 = arith.constant 0.000000e+00 : f32
    %51 = vector.shape_cast %50 : vector<128x1xi1> to vector<128x1xi1>
    %52 = vector.broadcast %51 : vector<128x1xi1> to vector<128x32xi1>
    %53 = vector.broadcast %cst_15 : f32 to vector<128x32xf32>
    %54 = arith.select %52, %40, %53 : vector<128x32xi1>, vector<128x32xf32>
    %cst_16 = arith.constant 0.000000e+00 : f32
    %55 = vector.shape_cast %50 : vector<128x1xi1> to vector<128x1xi1>
    %56 = vector.broadcast %55 : vector<128x1xi1> to vector<128x32xi1>
    %57 = vector.broadcast %cst_16 : f32 to vector<128x32xf32>
    %58 = arith.select %56, %44, %57 : vector<128x32xi1>, vector<128x32xf32>
    %c0_17 = arith.constant 0 : index
    %c0_18 = arith.constant 0 : index
    %59 = vector.load %arg3[%c0_17, %c0_18] : memref<1x128xi32, #tpu.memory_space<vmem>>, vector<1x128xi32>
    %60 = tpu.iota {dimensions = array<i32: 0>} : vector<8x128xi32>
    %61 = vector.broadcast %59 : vector<1x128xi32> to vector<8x128xi32>
    %62 = arith.cmpi eq, %60, %61 : vector<8x128xi32>
    %63 = arith.extui %62 : vector<8x128xi1> to vector<8x128xi32>
    %64 = arith.sitofp %63 : vector<8x128xi32> to vector<8x128xf32>
    %c0_19 = arith.constant 0 : index
    %c0_20 = arith.constant 0 : index
    %65 = vector.load %arg10[%c0_19, %c0_20] : memref<8x32xf32, #tpu.memory_space<vmem>>, vector<8x32xf32>
    %cst_21 = arith.constant dense<0.000000e+00> : vector<8x32xf32>
    %66 = tpu.matmul %64, %54, %cst_21 {dimension_numbers = #tpu.dot_dimension_numbers<[1], [0], [0], [1], [0, 0, 1, 1], [], []>} : vector<8x128xf32>, vector<128x32xf32>, vector<8x32xf32> -> vector<8x32xf32>
    %67 = arith.addf %65, %66 : vector<8x32xf32>
    %c0_22 = arith.constant 0 : index
    %c0_23 = arith.constant 0 : index
    %68 = vector.load %arg10[%c0_22, %c0_23] : memref<8x32xf32, #tpu.memory_space<vmem>>, vector<8x32xf32>
    tpu.vector_store %arg10[%c0_22, %c0_23], %67 {strides = array<i32>} : memref<8x32xf32, #tpu.memory_space<vmem>>, vector<8x32xf32>,
    %c0_24 = arith.constant 0 : index
    %c0_25 = arith.constant 0 : index
    %69 = vector.load %arg11[%c0_24, %c0_25] : memref<8x32xf32, #tpu.memory_space<vmem>>, vector<8x32xf32>
    %cst_26 = arith.constant dense<0.000000e+00> : vector<8x32xf32>
    %70 = tpu.matmul %64, %58, %cst_26 {dimension_numbers = #tpu.dot_dimension_numbers<[1], [0], [0], [1], [0, 0, 1, 1], [], []>} : vector<8x128xf32>, vector<128x32xf32>, vector<8x32xf32> -> vector<8x32xf32>
    %71 = arith.addf %69, %70 : vector<8x32xf32>
    %c0_27 = arith.constant 0 : index
    %c0_28 = arith.constant 0 : index
    %72 = vector.load %arg11[%c0_27, %c0_28] : memref<8x32xf32, #tpu.memory_space<vmem>>, vector<8x32xf32>
    tpu.vector_store %arg11[%c0_27, %c0_28], %71 {strides = array<i32>} : memref<8x32xf32, #tpu.memory_space<vmem>>, vector<8x32xf32>,
    %c0_i32_29 = arith.constant 0 : i32
    %73 = arith.cmpi eq, %arg0, %c0_i32_29 : i32
    %74 = arith.extui %73 : i1 to i32
    %c0_i32_30 = arith.constant 0 : i32
    %75 = arith.cmpi ne, %74, %c0_i32_30 : i32
    scf.if %75 {
      %c0_31 = arith.constant 0 : index
      %c0_32 = arith.constant 0 : index
      %76 = vector.load %arg5[%c0_31, %c0_32] : memref<8x1xf32, #tpu.memory_space<vmem>>, vector<8x1xf32>
      %c0_33 = arith.constant 0 : index
      %c0_34 = arith.constant 0 : index
      %77 = vector.load %arg10[%c0_33, %c0_34] : memref<8x32xf32, #tpu.memory_space<vmem>>, vector<8x32xf32>
      %78 = vector.broadcast %76 : vector<8x1xf32> to vector<8x32xf32>
      %79 = arith.mulf %77, %78 : vector<8x32xf32>
      %c0_35 = arith.constant 0 : index
      %c0_36 = arith.constant 0 : index
      %80 = vector.load %arg11[%c0_35, %c0_36] : memref<8x32xf32, #tpu.memory_space<vmem>>, vector<8x32xf32>
      %81 = vector.broadcast %76 : vector<8x1xf32> to vector<8x32xf32>
      %82 = arith.mulf %80, %81 : vector<8x32xf32>
      %c0_37 = arith.constant 0 : index
      %c0_38 = arith.constant 0 : index
      %83 = vector.load %arg6[%c0_37, %c0_38] : memref<32x128xf32, #tpu.memory_space<vmem>>, vector<32x128xf32>
      %cst_39 = arith.constant dense<0.000000e+00> : vector<8x128xf32>
      %84 = tpu.matmul %79, %83, %cst_39 {dimension_numbers = #tpu.dot_dimension_numbers<[1], [0], [0], [1], [0, 0, 1, 1], [], []>} : vector<8x32xf32>, vector<32x128xf32>, vector<8x128xf32> -> vector<8x128xf32>
      %c0_40 = arith.constant 0 : index
      %c0_41 = arith.constant 0 : index
      %85 = vector.load %arg7[%c0_40, %c0_41] : memref<32x128xf32, #tpu.memory_space<vmem>>, vector<32x128xf32>
      %cst_42 = arith.constant dense<0.000000e+00> : vector<8x128xf32>
      %86 = tpu.matmul %82, %85, %cst_42 {dimension_numbers = #tpu.dot_dimension_numbers<[1], [0], [0], [1], [0, 0, 1, 1], [], []>} : vector<8x32xf32>, vector<32x128xf32>, vector<8x128xf32> -> vector<8x128xf32>
      %87 = arith.addf %84, %86 : vector<8x128xf32>
      %c0_43 = arith.constant 0 : index
      %c0_44 = arith.constant 0 : index
      %88 = vector.load %arg8[%c0_43, %c0_44] : memref<1x128xf32, #tpu.memory_space<vmem>>, vector<1x128xf32>
      %89 = vector.broadcast %88 : vector<1x128xf32> to vector<8x128xf32>
      %90 = arith.addf %87, %89 : vector<8x128xf32>
      %c0_45 = arith.constant 0 : index
      %c0_46 = arith.constant 0 : index
      %91 = vector.load %arg9[%c0_45, %c0_46] : memref<8x128xf32, #tpu.memory_space<vmem>>, vector<8x128xf32>
      tpu.vector_store %arg9[%c0_45, %c0_46], %90 {strides = array<i32>} : memref<8x128xf32, #tpu.memory_space<vmem>>, vector<8x128xf32>,
    } else {
    }
    return
  }
  func.func @transform_0(%arg0: i32) -> (i32, i32) {
    %c0_i32 = arith.constant 0 : i32
    %c0_i32_0 = arith.constant 0 : i32
    return %arg0, %c0_i32 : i32, i32
  }
  func.func @transform_1(%arg0: i32) -> (i32, i32) {
    %c0_i32 = arith.constant 0 : i32
    %c0_i32_0 = arith.constant 0 : i32
    return %arg0, %c0_i32 : i32, i32
  }
  func.func @transform_2(%arg0: i32) -> (i32, i32) {
    %c0_i32 = arith.constant 0 : i32
    %c0_i32_0 = arith.constant 0 : i32
    return %c0_i32, %arg0 : i32, i32
  }
  func.func @transform_3(%arg0: i32) -> (i32, i32) {
    %c0_i32 = arith.constant 0 : i32
    %c0_i32_0 = arith.constant 0 : i32
    return %arg0, %c0_i32 : i32, i32
  }
  func.func @transform_4(%arg0: i32) -> (i32, i32) {
    %c0_i32 = arith.constant 0 : i32
    %c0_i32_0 = arith.constant 0 : i32
    %c0_i32_1 = arith.constant 0 : i32
    return %c0_i32, %c0_i32_0 : i32, i32
  }
  func.func @transform_5(%arg0: i32) -> (i32, i32) {
    %c0_i32 = arith.constant 0 : i32
    %c0_i32_0 = arith.constant 0 : i32
    %c0_i32_1 = arith.constant 0 : i32
    return %c0_i32, %c0_i32_0 : i32, i32
  }
  func.func @transform_6(%arg0: i32) -> (i32, i32) {
    %c0_i32 = arith.constant 0 : i32
    %c0_i32_0 = arith.constant 0 : i32
    %c0_i32_1 = arith.constant 0 : i32
    return %c0_i32, %c0_i32_0 : i32, i32
  }
  func.func @transform_7(%arg0: i32) -> (i32, i32) {
    %c0_i32 = arith.constant 0 : i32
    %c0_i32_0 = arith.constant 0 : i32
    %c0_i32_1 = arith.constant 0 : i32
    return %c0_i32, %c0_i32_0 : i32, i32
  }
  func.func @transform_8(%arg0: i32) -> (i32, i32) {
    %c0_i32 = arith.constant 0 : i32
    %c0_i32_0 = arith.constant 0 : i32
    %c0_i32_1 = arith.constant 0 : i32
    return %c0_i32, %c0_i32_0 : i32, i32
  }
}

</mosaic_0001>

<llo_original>
// kernel: tpu_custom_call.1
$region0: #{tpu_custom_call.1}
  #allocation0 [shape = 'u32[]', space=smem, size = 0x4, offset = 0x4, fixed_abs, tag = 'smem constant byte address 0x4 - core index']
  #allocation1 [shape = 'u32[144,128]{1,0:T(1,128)}', space=vmem, size = 0x12000, scoped, tag = 'internal scratch']
  #allocation2 [shape = 'f32[8,32]{1,0:T(8,128)}', space=vmem, size = 0x1000, scoped, tag = 'scratch operand']
  #allocation3 [shape = 'f32[8,32]{1,0:T(8,128)}', space=vmem, size = 0x1000, scoped, tag = 'scratch operand']
  %s0 = inlined_call_operand.vmem [shape: f32[8,128], index: 0, kind: input, shape index: {}]
  %s1 = inlined_call_operand.vmem [shape: s32[128,1], index: 1, kind: input, shape index: {}]
  %s2 = inlined_call_operand.vmem [shape: s32[1,128], index: 2, kind: input, shape index: {}]
  %s3 = inlined_call_operand.vmem [shape: f32[128,1], index: 3, kind: input, shape index: {}]
  %s4 = inlined_call_operand.vmem [shape: f32[8,1], index: 4, kind: input, shape index: {}]
  %s5 = inlined_call_operand.vmem [shape: f32[32,128], index: 5, kind: input, shape index: {}]
  %s6 = inlined_call_operand.vmem [shape: f32[32,128], index: 6, kind: input, shape index: {}]
  %s7 = inlined_call_operand.vmem [shape: f32[1,128], index: 7, kind: input, shape index: {}]
  %s8 = inlined_call_operand.hbm [shape: f32[8,128], index: 8, kind: output, shape index: {}]
  %s9 = sld [smem:[#allocation0]]
  $region50: #{tpu_custom_call.1} parent=0
    _
  %s11 = ssub.s32 1, %s9
  %s12 = scalar_select 0, %s11, %s9
  $region1: #{tpu_custom_call.1} parent=0
    #allocation4 [shape = 'u8[4096]{0}', space=vmem, size = 0x1000, scoped, tag = 'output window, operand 0, single buffered']
    #allocation5 [shape = 's32[1]{0}', space=sflag, size = 0x4, scoped, tag = 'scoped memory for tpu_custom_call.1']
    %13 = vsyncpa [#allocation5], 0
    // Predicated region
    $region2: #{tpu_custom_call.1} parent=1 // pred_check
      _
    $region3: #{tpu_custom_call.1} parent=1 // pred_check_branch
      %15 = sbr.rel (0) target = $region5
    $region4: #{tpu_custom_call.1} parent=1 // pred_region
      _
    $region5: #{tpu_custom_call.1} parent=1 // pred_fallthru
      _
    // Predicated region
    $region6: #{tpu_custom_call.1} parent=1 // pred_check
      _
    $region7: #{tpu_custom_call.1} parent=1 // pred_check_branch
      %17 = sbr.rel (0) target = $region9
    $region8: #{tpu_custom_call.1} parent=1 // pred_region
      _
    $region9: #{tpu_custom_call.1} parent=1 // pred_fallthru
      _
    // Predicated region
    $region10: #{tpu_custom_call.1} parent=1 // pred_check
      _
    $region11: #{tpu_custom_call.1} parent=1 // pred_check_branch
      %19 = sbr.rel (0) target = $region13
    $region12: #{tpu_custom_call.1} parent=1 // pred_region
      _
    $region13: #{tpu_custom_call.1} parent=1 // pred_fallthru
      _
    // Predicated region
    $region14: #{tpu_custom_call.1} parent=1 // pred_check
      _
    $region15: #{tpu_custom_call.1} parent=1 // pred_check_branch
      %21 = sbr.rel (0) target = $region17
    $region16: #{tpu_custom_call.1} parent=1 // pred_region
      _
    $region17: #{tpu_custom_call.1} parent=1 // pred_fallthru
      _
    // Predicated region
    $region18: #{tpu_custom_call.1} parent=1 // pred_check
      _
    $region19: #{tpu_custom_call.1} parent=1 // pred_check_branch
      %23 = sbr.rel (0) target = $region21
    $region20: #{tpu_custom_call.1} parent=1 // pred_region
      _
    $region21: #{tpu_custom_call.1} parent=1 // pred_fallthru
      _
    // Predicated region
    $region22: #{tpu_custom_call.1} parent=1 // pred_check
      _
    $region23: #{tpu_custom_call.1} parent=1 // pred_check_branch
      %25 = sbr.rel (0) target = $region25
    $region24: #{tpu_custom_call.1} parent=1 // pred_region
      _
    $region25: #{tpu_custom_call.1} parent=1 // pred_fallthru
      _
    // Predicated region
    $region26: #{tpu_custom_call.1} parent=1 // pred_check
      _
    $region27: #{tpu_custom_call.1} parent=1 // pred_check_branch
      %27 = sbr.rel (0) target = $region29
    $region28: #{tpu_custom_call.1} parent=1 // pred_region
      _
    $region29: #{tpu_custom_call.1} parent=1 // pred_fallthru
      _
    // Predicated region
    $region30: #{tpu_custom_call.1} parent=1 // pred_check
      _
    $region31: #{tpu_custom_call.1} parent=1 // pred_check_branch
      %29 = sbr.rel (0) target = $region33
    $region32: #{tpu_custom_call.1} parent=1 // pred_region
      _
    $region33: #{tpu_custom_call.1} parent=1 // pred_fallthru
      _
    %p30 = scmp.eq.s32.totalorder 0, 0
    // Predicated region
    $region34: #{tpu_custom_call.1} parent=1 // pred_check
      %p31 = pneg %p30
    $region35: #{tpu_custom_call.1} parent=1 // pred_check_branch
      %33 = sbr.rel (%p31) target = $region37
    $region36: #{tpu_custom_call.1} parent=1 // pred_region
      %vm34 = vcmask 261120
      %35 = vst.msk [vmem:[#allocation2] sm:$0xff] %vm34, 0.0
      %36 = vst.msk [vmem:[#allocation3] sm:$0xff] %vm34, 0.0
    $region37: #{tpu_custom_call.1} parent=1 // pred_fallthru
      _
    %v37 = vld [vmem:[%s1] sm:$0xff]
    %v38 = vld [vmem:[%s1 + $0x8] sm:$0xff]
    %v39 = vld [vmem:[%s1 + $0x10] sm:$0xff]
    %v40 = vld [vmem:[%s1 + $0x18] sm:$0xff]
    %v41 = vld [vmem:[%s1 + $0x20] sm:$0xff]
    %v42 = vld [vmem:[%s1 + $0x28] sm:$0xff]
    %v43 = vld [vmem:[%s1 + $0x30] sm:$0xff]
    %v44 = vld [vmem:[%s1 + $0x38] sm:$0xff]
    %v45 = vld [vmem:[%s1 + $0x40] sm:$0xff]
    %v46 = vld [vmem:[%s1 + $0x48] sm:$0xff]
    %v47 = vld [vmem:[%s1 + $0x50] sm:$0xff]
    %v48 = vld [vmem:[%s1 + $0x58] sm:$0xff]
    %v49 = vld [vmem:[%s1 + $0x60] sm:$0xff]
    %v50 = vld [vmem:[%s1 + $0x68] sm:$0xff]
    %v51 = vld [vmem:[%s1 + $0x70] sm:$0xff]
    %v52 = vld [vmem:[%s1 + $0x78] sm:$0xff]
    %v53 = vld [vmem:[%s0] sm:$0xff]
    %v54 = vld [vmem:[%s0 + $0x8] sm:$0xff]
    %v55 = vld [vmem:[%s0 + $0x10] sm:$0xff]
    %v56 = vld [vmem:[%s0 + $0x18] sm:$0xff]
    %v57 = vld [vmem:[%s0 + $0x20] sm:$0xff]
    %v58 = vld [vmem:[%s0 + $0x28] sm:$0xff]
    %v59 = vld [vmem:[%s0 + $0x30] sm:$0xff]
    %v60 = vld [vmem:[%s0 + $0x38] sm:$0xff]
    %v61 = vld [vmem:[%s0 + $0x40] sm:$0xff]
    %v62 = vld [vmem:[%s0 + $0x48] sm:$0xff]
    %v63 = vld [vmem:[%s0 + $0x50] sm:$0xff]
    %v64 = vld [vmem:[%s0 + $0x58] sm:$0xff]
    %v65 = vld [vmem:[%s0 + $0x60] sm:$0xff]
    %v66 = vld [vmem:[%s0 + $0x68] sm:$0xff]
    %v67 = vld [vmem:[%s0 + $0x70] sm:$0xff]
    %v68 = vld [vmem:[%s0 + $0x78] sm:$0xff]
    %vm69 = vcmp.eq.s32.totalorder %v37, 0
    %vm70 = vcmp.eq.s32.totalorder %v38, 0
    %vm71 = vcmp.eq.s32.totalorder %v39, 0
    %vm72 = vcmp.eq.s32.totalorder %v40, 0
    %vm73 = vcmp.eq.s32.totalorder %v41, 0
    %vm74 = vcmp.eq.s32.totalorder %v42, 0
    %vm75 = vcmp.eq.s32.totalorder %v43, 0
    %vm76 = vcmp.eq.s32.totalorder %v44, 0
    %vm77 = vcmp.eq.s32.totalorder %v45, 0
    %vm78 = vcmp.eq.s32.totalorder %v46, 0
    %vm79 = vcmp.eq.s32.totalorder %v47, 0
    %vm80 = vcmp.eq.s32.totalorder %v48, 0
    %vm81 = vcmp.eq.s32.totalorder %v49, 0
    %vm82 = vcmp.eq.s32.totalorder %v50, 0
    %vm83 = vcmp.eq.s32.totalorder %v51, 0
    %vm84 = vcmp.eq.s32.totalorder %v52, 0
    %v85 = vsel %vm69, 1, 0
    %v86 = vsel %vm70, 1, 0
    %v87 = vsel %vm71, 1, 0
    %v88 = vsel %vm72, 1, 0
    %v89 = vsel %vm73, 1, 0
    %v90 = vsel %vm74, 1, 0
    %v91 = vsel %vm75, 1, 0
    %v92 = vsel %vm76, 1, 0
    %v93 = vsel %vm77, 1, 0
    %v94 = vsel %vm78, 1, 0
    %v95 = vsel %vm79, 1, 0
    %v96 = vsel %vm80, 1, 0
    %v97 = vsel %vm81, 1, 0
    %v98 = vsel %vm82, 1, 0
    %v99 = vsel %vm83, 1, 0
    %v100 = vsel %vm84, 1, 0
    %101 = vset.pattern.permute.xlu0 0
    %102 = vperm.xlu0 %101, %v85
    %v103 = vpop.permute.xlu0 %102
    %104 = vset.pattern.permute.xlu0 0
    %105 = vperm.xlu0 %104, %v86
    %v106 = vpop.permute.xlu0 %105
    %107 = vset.pattern.permute.xlu0 0
    %108 = vperm.xlu0 %107, %v87
    %v109 = vpop.permute.xlu0 %108
    %110 = vset.pattern.permute.xlu0 0
    %111 = vperm.xlu0 %110, %v88
    %v112 = vpop.permute.xlu0 %111
    %113 = vset.pattern.permute.xlu0 0
    %114 = vperm.xlu0 %113, %v89
    %v115 = vpop.permute.xlu0 %114
    %116 = vset.pattern.permute.xlu0 0
    %117 = vperm.xlu0 %116, %v90
    %v118 = vpop.permute.xlu0 %117
    %119 = vset.pattern.permute.xlu0 0
    %120 = vperm.xlu0 %119, %v91
    %v121 = vpop.permute.xlu0 %120
    %122 = vset.pattern.permute.xlu0 0
    %123 = vperm.xlu0 %122, %v92
    %v124 = vpop.permute.xlu0 %123
    %125 = vset.pattern.permute.xlu0 0
    %126 = vperm.xlu0 %125, %v93
    %v127 = vpop.permute.xlu0 %126
    %128 = vset.pattern.permute.xlu0 0
    %129 = vperm.xlu0 %128, %v94
    %v130 = vpop.permute.xlu0 %129
    %131 = vset.pattern.permute.xlu0 0
    %132 = vperm.xlu0 %131, %v95
    %v133 = vpop.permute.xlu0 %132
    %134 = vset.pattern.permute.xlu0 0
    %135 = vperm.xlu0 %134, %v96
    %v136 = vpop.permute.xlu0 %135
    %137 = vset.pattern.permute.xlu0 0
    %138 = vperm.xlu0 %137, %v97
    %v139 = vpop.permute.xlu0 %138
    %140 = vset.pattern.permute.xlu0 0
    %141 = vperm.xlu0 %140, %v98
    %v142 = vpop.permute.xlu0 %141
    %143 = vset.pattern.permute.xlu0 0
    %144 = vperm.xlu0 %143, %v99
    %v145 = vpop.permute.xlu0 %144
    %146 = vset.pattern.permute.xlu0 0
    %147 = vperm.xlu0 %146, %v100
    %v148 = vpop.permute.xlu0 %147
    %vm149 = vcmp.eq.s32.totalorder %v103, 1
    %vm150 = vcmp.eq.s32.totalorder %v106, 1
    %vm151 = vcmp.eq.s32.totalorder %v109, 1
    %vm152 = vcmp.eq.s32.totalorder %v112, 1
    %vm153 = vcmp.eq.s32.totalorder %v115, 1
    %vm154 = vcmp.eq.s32.totalorder %v118, 1
    %vm155 = vcmp.eq.s32.totalorder %v121, 1
    %vm156 = vcmp.eq.s32.totalorder %v124, 1
    %vm157 = vcmp.eq.s32.totalorder %v127, 1
    %vm158 = vcmp.eq.s32.totalorder %v130, 1
    %vm159 = vcmp.eq.s32.totalorder %v133, 1
    %vm160 = vcmp.eq.s32.totalorder %v136, 1
    %vm161 = vcmp.eq.s32.totalorder %v139, 1
    %vm162 = vcmp.eq.s32.totalorder %v142, 1
    %vm163 = vcmp.eq.s32.totalorder %v145, 1
    %vm164 = vcmp.eq.s32.totalorder %v148, 1
    %v165 = vsel %vm149, %v53, 0.0
    %v166 = vsel %vm150, %v54, 0.0
    %v167 = vsel %vm151, %v55, 0.0
    %v168 = vsel %vm152, %v56, 0.0
    %v169 = vsel %vm153, %v57, 0.0
    %v170 = vsel %vm154, %v58, 0.0
    %v171 = vsel %vm155, %v59, 0.0
    %v172 = vsel %vm156, %v60, 0.0
    %v173 = vsel %vm157, %v61, 0.0
    %v174 = vsel %vm158, %v62, 0.0
    %v175 = vsel %vm159, %v63, 0.0
    %v176 = vsel %vm160, %v64, 0.0
    %v177 = vsel %vm161, %v65, 0.0
    %v178 = vsel %vm162, %v66, 0.0
    %v179 = vsel %vm163, %v67, 0.0
    %v180 = vsel %vm164, %v68, 0.0
    %v181 = vadd.f32 %v165, 0.0
    %v182 = vadd.f32 %v166, 0.0
    %v183 = vadd.f32 %v167, 0.0
    %v184 = vadd.f32 %v168, 0.0
    %v185 = vadd.f32 %v169, 0.0
    %v186 = vadd.f32 %v170, 0.0
    %v187 = vadd.f32 %v171, 0.0
    %v188 = vadd.f32 %v172, 0.0
    %v189 = vadd.f32 %v173, 0.0
    %v190 = vadd.f32 %v174, 0.0
    %v191 = vadd.f32 %v175, 0.0
    %v192 = vadd.f32 %v176, 0.0
    %v193 = vadd.f32 %v177, 0.0
    %v194 = vadd.f32 %v178, 0.0
    %v195 = vadd.f32 %v179, 0.0
    %v196 = vadd.f32 %v180, 0.0
    %v197 = vadd.f32 %v53, 0.0
    %v198 = vadd.f32 %v54, 0.0
    %v199 = vadd.f32 %v55, 0.0
    %v200 = vadd.f32 %v56, 0.0
    %v201 = vadd.f32 %v57, 0.0
    %v202 = vadd.f32 %v58, 0.0
    %v203 = vadd.f32 %v59, 0.0
    %v204 = vadd.f32 %v60, 0.0
    %v205 = vadd.f32 %v61, 0.0
    %v206 = vadd.f32 %v62, 0.0
    %v207 = vadd.f32 %v63, 0.0
    %v208 = vadd.f32 %v64, 0.0
    %v209 = vadd.f32 %v65, 0.0
    %v210 = vadd.f32 %v66, 0.0
    %v211 = vadd.f32 %v67, 0.0
    %v212 = vadd.f32 %v68, 0.0
    %vm213 = vcmp.eq.s32.totalorder %v37, 1
    %vm214 = vcmp.eq.s32.totalorder %v38, 1
    %vm215 = vcmp.eq.s32.totalorder %v39, 1
    %vm216 = vcmp.eq.s32.totalorder %v40, 1
    %vm217 = vcmp.eq.s32.totalorder %v41, 1
    %vm218 = vcmp.eq.s32.totalorder %v42, 1
    %vm219 = vcmp.eq.s32.totalorder %v43, 1
    %vm220 = vcmp.eq.s32.totalorder %v44, 1
    %vm221 = vcmp.eq.s32.totalorder %v45, 1
    %vm222 = vcmp.eq.s32.totalorder %v46, 1
    %vm223 = vcmp.eq.s32.totalorder %v47, 1
    %vm224 = vcmp.eq.s32.totalorder %v48, 1
    %vm225 = vcmp.eq.s32.totalorder %v49, 1
    %vm226 = vcmp.eq.s32.totalorder %v50, 1
    %vm227 = vcmp.eq.s32.totalorder %v51, 1
    %vm228 = vcmp.eq.s32.totalorder %v52, 1
    %v229 = vsel %vm213, 1, 0
    %v230 = vsel %vm214, 1, 0
    %v231 = vsel %vm215, 1, 0
    %v232 = vsel %vm216, 1, 0
    %v233 = vsel %vm217, 1, 0
    %v234 = vsel %vm218, 1, 0
    %v235 = vsel %vm219, 1, 0
    %v236 = vsel %vm220, 1, 0
    %v237 = vsel %vm221, 1, 0
    %v238 = vsel %vm222, 1, 0
    %v239 = vsel %vm223, 1, 0
    %v240 = vsel %vm224, 1, 0
    %v241 = vsel %vm225, 1, 0
    %v242 = vsel %vm226, 1, 0
    %v243 = vsel %vm227, 1, 0
    %v244 = vsel %vm228, 1, 0
    %245 = vset.pattern.permute.xlu0 0
    %246 = vperm.xlu0 %245, %v229
    %v247 = vpop.permute.xlu0 %246
    %248 = vset.pattern.permute.xlu0 0
    %249 = vperm.xlu0 %248, %v230
    %v250 = vpop.permute.xlu0 %249
    %251 = vset.pattern.permute.xlu0 0
    %252 = vperm.xlu0 %251, %v231
    %v253 = vpop.permute.xlu0 %252
    %254 = vset.pattern.permute.xlu0 0
    %255 = vperm.xlu0 %254, %v232
    %v256 = vpop.permute.xlu0 %255
    %257 = vset.pattern.permute.xlu0 0
    %258 = vperm.xlu0 %257, %v233
    %v259 = vpop.permute.xlu0 %258
    %260 = vset.pattern.permute.xlu0 0
    %261 = vperm.xlu0 %260, %v234
    %v262 = vpop.permute.xlu0 %261
    %263 = vset.pattern.permute.xlu0 0
    %264 = vperm.xlu0 %263, %v235
    %v265 = vpop.permute.xlu0 %264
    %266 = vset.pattern.permute.xlu0 0
    %267 = vperm.xlu0 %266, %v236
    %v268 = vpop.permute.xlu0 %267
    %269 = vset.pattern.permute.xlu0 0
    %270 = vperm.xlu0 %269, %v237
    %v271 = vpop.permute.xlu0 %270
    %272 = vset.pattern.permute.xlu0 0
    %273 = vperm.xlu0 %272, %v238
    %v274 = vpop.permute.xlu0 %273
    %275 = vset.pattern.permute.xlu0 0
    %276 = vperm.xlu0 %275, %v239
    %v277 = vpop.permute.xlu0 %276
    %278 = vset.pattern.permute.xlu0 0
    %279 = vperm.xlu0 %278, %v240
    %v280 = vpop.permute.xlu0 %279
    %281 = vset.pattern.permute.xlu0 0
    %282 = vperm.xlu0 %281, %v241
    %v283 = vpop.permute.xlu0 %282
    %284 = vset.pattern.permute.xlu0 0
    %285 = vperm.xlu0 %284, %v242
    %v286 = vpop.permute.xlu0 %285
    %287 = vset.pattern.permute.xlu0 0
    %288 = vperm.xlu0 %287, %v243
    %v289 = vpop.permute.xlu0 %288
    %290 = vset.pattern.permute.xlu0 0
    %291 = vperm.xlu0 %290, %v244
    %v292 = vpop.permute.xlu0 %291
    %vm293 = vcmp.eq.s32.totalorder %v247, 1
    %vm294 = vcmp.eq.s32.totalorder %v250, 1
    %vm295 = vcmp.eq.s32.totalorder %v253, 1
    %vm296 = vcmp.eq.s32.totalorder %v256, 1
    %vm297 = vcmp.eq.s32.totalorder %v259, 1
    %vm298 = vcmp.eq.s32.totalorder %v262, 1
    %vm299 = vcmp.eq.s32.totalorder %v265, 1
    %vm300 = vcmp.eq.s32.totalorder %v268, 1
    %vm301 = vcmp.eq.s32.totalorder %v271, 1
    %vm302 = vcmp.eq.s32.totalorder %v274, 1
    %vm303 = vcmp.eq.s32.totalorder %v277, 1
    %vm304 = vcmp.eq.s32.totalorder %v280, 1
    %vm305 = vcmp.eq.s32.totalorder %v283, 1
    %vm306 = vcmp.eq.s32.totalorder %v286, 1
    %vm307 = vcmp.eq.s32.totalorder %v289, 1
    %vm308 = vcmp.eq.s32.totalorder %v292, 1
    %v309 = vsel %vm293, %v53, 0.0
    %v310 = vsel %vm294, %v54, 0.0
    %v311 = vsel %vm295, %v55, 0.0
    %v312 = vsel %vm296, %v56, 0.0
    %v313 = vsel %vm297, %v57, 0.0
    %v314 = vsel %vm298, %v58, 0.0
    %v315 = vsel %vm299, %v59, 0.0
    %v316 = vsel %vm300, %v60, 0.0
    %v317 = vsel %vm301, %v61, 0.0
    %v318 = vsel %vm302, %v62, 0.0
    %v319 = vsel %vm303, %v63, 0.0
    %v320 = vsel %vm304, %v64, 0.0
    %v321 = vsel %vm305, %v65, 0.0
    %v322 = vsel %vm306, %v66, 0.0
    %v323 = vsel %vm307, %v67, 0.0
    %v324 = vsel %vm308, %v68, 0.0
    %341 = vrot.lane.b32.xlu0 %v309, 96
    %v342 = vpop.permute.xlu0 %341
    %343 = vrot.lane.b32.xlu0 %v310, 96
    %v344 = vpop.permute.xlu0 %343
    %345 = vrot.lane.b32.xlu0 %v311, 96
    %v346 = vpop.permute.xlu0 %345
    %347 = vrot.lane.b32.xlu0 %v312, 96
    %v348 = vpop.permute.xlu0 %347
    %349 = vrot.lane.b32.xlu0 %v313, 96
    %v350 = vpop.permute.xlu0 %349
    %351 = vrot.lane.b32.xlu0 %v314, 96
    %v352 = vpop.permute.xlu0 %351
    %353 = vrot.lane.b32.xlu0 %v315, 96
    %v354 = vpop.permute.xlu0 %353
    %355 = vrot.lane.b32.xlu0 %v316, 96
    %v356 = vpop.permute.xlu0 %355
    %357 = vrot.lane.b32.xlu0 %v317, 96
    %v358 = vpop.permute.xlu0 %357
    %359 = vrot.lane.b32.xlu0 %v318, 96
    %v360 = vpop.permute.xlu0 %359
    %361 = vrot.lane.b32.xlu0 %v319, 96
    %v362 = vpop.permute.xlu0 %361
    %363 = vrot.lane.b32.xlu0 %v320, 96
    %v364 = vpop.permute.xlu0 %363
    %365 = vrot.lane.b32.xlu0 %v321, 96
    %v366 = vpop.permute.xlu0 %365
    %367 = vrot.lane.b32.xlu0 %v322, 96
    %v368 = vpop.permute.xlu0 %367
    %369 = vrot.lane.b32.xlu0 %v323, 96
    %v370 = vpop.permute.xlu0 %369
    %371 = vrot.lane.b32.xlu0 %v324, 96
    %v372 = vpop.permute.xlu0 %371
    %v389 = vadd.f32 %v181, %v342
    %v390 = vadd.f32 %v182, %v344
    %v391 = vadd.f32 %v183, %v346
    %v392 = vadd.f32 %v184, %v348
    %v393 = vadd.f32 %v185, %v350
    %v394 = vadd.f32 %v186, %v352
    %v395 = vadd.f32 %v187, %v354
    %v396 = vadd.f32 %v188, %v356
    %v397 = vadd.f32 %v189, %v358
    %v398 = vadd.f32 %v190, %v360
    %v399 = vadd.f32 %v191, %v362
    %v400 = vadd.f32 %v192, %v364
    %v401 = vadd.f32 %v193, %v366
    %v402 = vadd.f32 %v194, %v368
    %v403 = vadd.f32 %v195, %v370
    %v404 = vadd.f32 %v196, %v372
    %421 = vrot.lane.b32.xlu0 %v53, 96
    %v422 = vpop.permute.xlu0 %421
    %423 = vrot.lane.b32.xlu0 %v54, 96
    %v424 = vpop.permute.xlu0 %423
    %425 = vrot.lane.b32.xlu0 %v55, 96
    %v426 = vpop.permute.xlu0 %425
    %427 = vrot.lane.b32.xlu0 %v56, 96
    %v428 = vpop.permute.xlu0 %427
    %429 = vrot.lane.b32.xlu0 %v57, 96
    %v430 = vpop.permute.xlu0 %429
    %431 = vrot.lane.b32.xlu0 %v58, 96
    %v432 = vpop.permute.xlu0 %431
    %433 = vrot.lane.b32.xlu0 %v59, 96
    %v434 = vpop.permute.xlu0 %433
    %435 = vrot.lane.b32.xlu0 %v60, 96
    %v436 = vpop.permute.xlu0 %435
    %437 = vrot.lane.b32.xlu0 %v61, 96
    %v438 = vpop.permute.xlu0 %437
    %439 = vrot.lane.b32.xlu0 %v62, 96
    %v440 = vpop.permute.xlu0 %439
    %441 = vrot.lane.b32.xlu0 %v63, 96
    %v442 = vpop.permute.xlu0 %441
    %443 = vrot.lane.b32.xlu0 %v64, 96
    %v444 = vpop.permute.xlu0 %443
    %445 = vrot.lane.b32.xlu0 %v65, 96
    %v446 = vpop.permute.xlu0 %445
    %447 = vrot.lane.b32.xlu0 %v66, 96
    %v448 = vpop.permute.xlu0 %447
    %449 = vrot.lane.b32.xlu0 %v67, 96
    %v450 = vpop.permute.xlu0 %449
    %451 = vrot.lane.b32.xlu0 %v68, 96
    %v452 = vpop.permute.xlu0 %451
    %v469 = vadd.f32 %v197, %v422
    %v470 = vadd.f32 %v198, %v424
    %v471 = vadd.f32 %v199, %v426
    %v472 = vadd.f32 %v200, %v428
    %v473 = vadd.f32 %v201, %v430
    %v474 = vadd.f32 %v202, %v432
    %v475 = vadd.f32 %v203, %v434
    %v476 = vadd.f32 %v204, %v436
    %v477 = vadd.f32 %v205, %v438
    %v478 = vadd.f32 %v206, %v440
    %v479 = vadd.f32 %v207, %v442
    %v480 = vadd.f32 %v208, %v444
    %v481 = vadd.f32 %v209, %v446
    %v482 = vadd.f32 %v210, %v448
    %v483 = vadd.f32 %v211, %v450
    %v484 = vadd.f32 %v212, %v452
    %vm485 = vcmp.eq.s32.totalorder %v37, 2
    %vm486 = vcmp.eq.s32.totalorder %v38, 2
    %vm487 = vcmp.eq.s32.totalorder %v39, 2
    %vm488 = vcmp.eq.s32.totalorder %v40, 2
    %vm489 = vcmp.eq.s32.totalorder %v41, 2
    %vm490 = vcmp.eq.s32.totalorder %v42, 2
    %vm491 = vcmp.eq.s32.totalorder %v43, 2
    %vm492 = vcmp.eq.s32.totalorder %v44, 2
    %vm493 = vcmp.eq.s32.totalorder %v45, 2
    %vm494 = vcmp.eq.s32.totalorder %v46, 2
    %vm495 = vcmp.eq.s32.totalorder %v47, 2
    %vm496 = vcmp.eq.s32.totalorder %v48, 2
    %vm497 = vcmp.eq.s32.totalorder %v49, 2
    %vm498 = vcmp.eq.s32.totalorder %v50, 2
    %vm499 = vcmp.eq.s32.totalorder %v51, 2
    %vm500 = vcmp.eq.s32.totalorder %v52, 2
    %v501 = vsel %vm485, 1, 0
    %v502 = vsel %vm486, 1, 0
    %v503 = vsel %vm487, 1, 0
    %v504 = vsel %vm488, 1, 0
    %v505 = vsel %vm489, 1, 0
    %v506 = vsel %vm490, 1, 0
    %v507 = vsel %vm491, 1, 0
    %v508 = vsel %vm492, 1, 0
    %v509 = vsel %vm493, 1, 0
    %v510 = vsel %vm494, 1, 0
    %v511 = vsel %vm495, 1, 0
    %v512 = vsel %vm496, 1, 0
    %v513 = vsel %vm497, 1, 0
    %v514 = vsel %vm498, 1, 0
    %v515 = vsel %vm499, 1, 0
    %v516 = vsel %vm500, 1, 0
    %517 = vset.pattern.permute.xlu0 0
    %518 = vperm.xlu0 %517, %v501
    %v519 = vpop.permute.xlu0 %518
    %520 = vset.pattern.permute.xlu0 0
    %521 = vperm.xlu0 %520, %v502
    %v522 = vpop.permute.xlu0 %521
    %523 = vset.pattern.permute.xlu0 0
    %524 = vperm.xlu0 %523, %v503
    %v525 = vpop.permute.xlu0 %524
    %526 = vset.pattern.permute.xlu0 0
    %527 = vperm.xlu0 %526, %v504
    %v528 = vpop.permute.xlu0 %527
    %529 = vset.pattern.permute.xlu0 0
    %530 = vperm.xlu0 %529, %v505
    %v531 = vpop.permute.xlu0 %530
    %532 = vset.pattern.permute.xlu0 0
    %533 = vperm.xlu0 %532, %v506
    %v534 = vpop.permute.xlu0 %533
    %535 = vset.pattern.permute.xlu0 0
    %536 = vperm.xlu0 %535, %v507
    %v537 = vpop.permute.xlu0 %536
    %538 = vset.pattern.permute.xlu0 0
    %539 = vperm.xlu0 %538, %v508
    %v540 = vpop.permute.xlu0 %539
    %541 = vset.pattern.permute.xlu0 0
    %542 = vperm.xlu0 %541, %v509
    %v543 = vpop.permute.xlu0 %542
    %544 = vset.pattern.permute.xlu0 0
    %545 = vperm.xlu0 %544, %v510
    %v546 = vpop.permute.xlu0 %545
    %547 = vset.pattern.permute.xlu0 0
    %548 = vperm.xlu0 %547, %v511
    %v549 = vpop.permute.xlu0 %548
    %550 = vset.pattern.permute.xlu0 0
    %551 = vperm.xlu0 %550, %v512
    %v552 = vpop.permute.xlu0 %551
    %553 = vset.pattern.permute.xlu0 0
    %554 = vperm.xlu0 %553, %v513
    %v555 = vpop.permute.xlu0 %554
    %556 = vset.pattern.permute.xlu0 0
    %557 = vperm.xlu0 %556, %v514
    %v558 = vpop.permute.xlu0 %557
    %559 = vset.pattern.permute.xlu0 0
    %560 = vperm.xlu0 %559, %v515
    %v561 = vpop.permute.xlu0 %560
    %562 = vset.pattern.permute.xlu0 0
    %563 = vperm.xlu0 %562, %v516
    %v564 = vpop.permute.xlu0 %563
    %vm565 = vcmp.eq.s32.totalorder %v519, 1
    %vm566 = vcmp.eq.s32.totalorder %v522, 1
    %vm567 = vcmp.eq.s32.totalorder %v525, 1
    %vm568 = vcmp.eq.s32.totalorder %v528, 1
    %vm569 = vcmp.eq.s32.totalorder %v531, 1
    %vm570 = vcmp.eq.s32.totalorder %v534, 1
    %vm571 = vcmp.eq.s32.totalorder %v537, 1
    %vm572 = vcmp.eq.s32.totalorder %v540, 1
    %vm573 = vcmp.eq.s32.totalorder %v543, 1
    %vm574 = vcmp.eq.s32.totalorder %v546, 1
    %vm575 = vcmp.eq.s32.totalorder %v549, 1
    %vm576 = vcmp.eq.s32.totalorder %v552, 1
    %vm577 = vcmp.eq.s32.totalorder %v555, 1
    %vm578 = vcmp.eq.s32.totalorder %v558, 1
    %vm579 = vcmp.eq.s32.totalorder %v561, 1
    %vm580 = vcmp.eq.s32.totalorder %v564, 1
    %v581 = vsel %vm565, %v53, 0.0
    %v582 = vsel %vm566, %v54, 0.0
    %v583 = vsel %vm567, %v55, 0.0
    %v584 = vsel %vm568, %v56, 0.0
    %v585 = vsel %vm569, %v57, 0.0
    %v586 = vsel %vm570, %v58, 0.0
    %v587 = vsel %vm571, %v59, 0.0
    %v588 = vsel %vm572, %v60, 0.0
    %v589 = vsel %vm573, %v61, 0.0
    %v590 = vsel %vm574, %v62, 0.0
    %v591 = vsel %vm575, %v63, 0.0
    %v592 = vsel %vm576, %v64, 0.0
    %v593 = vsel %vm577, %v65, 0.0
    %v594 = vsel %vm578, %v66, 0.0
    %v595 = vsel %vm579, %v67, 0.0
    %v596 = vsel %vm580, %v68, 0.0
    %613 = vrot.lane.b32.xlu0 %v581, 64
    %v614 = vpop.permute.xlu0 %613
    %615 = vrot.lane.b32.xlu0 %v582, 64
    %v616 = vpop.permute.xlu0 %615
    %617 = vrot.lane.b32.xlu0 %v583, 64
    %v618 = vpop.permute.xlu0 %617
    %619 = vrot.lane.b32.xlu0 %v584, 64
    %v620 = vpop.permute.xlu0 %619
    %621 = vrot.lane.b32.xlu0 %v585, 64
    %v622 = vpop.permute.xlu0 %621
    %623 = vrot.lane.b32.xlu0 %v586, 64
    %v624 = vpop.permute.xlu0 %623
    %625 = vrot.lane.b32.xlu0 %v587, 64
    %v626 = vpop.permute.xlu0 %625
    %627 = vrot.lane.b32.xlu0 %v588, 64
    %v628 = vpop.permute.xlu0 %627
    %629 = vrot.lane.b32.xlu0 %v589, 64
    %v630 = vpop.permute.xlu0 %629
    %631 = vrot.lane.b32.xlu0 %v590, 64
    %v632 = vpop.permute.xlu0 %631
    %633 = vrot.lane.b32.xlu0 %v591, 64
    %v634 = vpop.permute.xlu0 %633
    %635 = vrot.lane.b32.xlu0 %v592, 64
    %v636 = vpop.permute.xlu0 %635
    %637 = vrot.lane.b32.xlu0 %v593, 64
    %v638 = vpop.permute.xlu0 %637
    %639 = vrot.lane.b32.xlu0 %v594, 64
    %v640 = vpop.permute.xlu0 %639
    %641 = vrot.lane.b32.xlu0 %v595, 64
    %v642 = vpop.permute.xlu0 %641
    %643 = vrot.lane.b32.xlu0 %v596, 64
    %v644 = vpop.permute.xlu0 %643
    %v661 = vadd.f32 %v389, %v614
    %v662 = vadd.f32 %v390, %v616
    %v663 = vadd.f32 %v391, %v618
    %v664 = vadd.f32 %v392, %v620
    %v665 = vadd.f32 %v393, %v622
    %v666 = vadd.f32 %v394, %v624
    %v667 = vadd.f32 %v395, %v626
    %v668 = vadd.f32 %v396, %v628
    %v669 = vadd.f32 %v397, %v630
    %v670 = vadd.f32 %v398, %v632
    %v671 = vadd.f32 %v399, %v634
    %v672 = vadd.f32 %v400, %v636
    %v673 = vadd.f32 %v401, %v638
    %v674 = vadd.f32 %v402, %v640
    %v675 = vadd.f32 %v403, %v642
    %v676 = vadd.f32 %v404, %v644
    %677 = vrot.lane.b32.xlu0 %v53, 64
    %v678 = vpop.permute.xlu0 %677
    %679 = vrot.lane.b32.xlu0 %v54, 64
    %v680 = vpop.permute.xlu0 %679
    %681 = vrot.lane.b32.xlu0 %v55, 64
    %v682 = vpop.permute.xlu0 %681
    %683 = vrot.lane.b32.xlu0 %v56, 64
    %v684 = vpop.permute.xlu0 %683
    %685 = vrot.lane.b32.xlu0 %v57, 64
    %v686 = vpop.permute.xlu0 %685
    %687 = vrot.lane.b32.xlu0 %v58, 64
    %v688 = vpop.permute.xlu0 %687
    %689 = vrot.lane.b32.xlu0 %v59, 64
    %v690 = vpop.permute.xlu0 %689
    %691 = vrot.lane.b32.xlu0 %v60, 64
    %v692 = vpop.permute.xlu0 %691
    %693 = vrot.lane.b32.xlu0 %v61, 64
    %v694 = vpop.permute.xlu0 %693
    %695 = vrot.lane.b32.xlu0 %v62, 64
    %v696 = vpop.permute.xlu0 %695
    %697 = vrot.lane.b32.xlu0 %v63, 64
    %v698 = vpop.permute.xlu0 %697
    %699 = vrot.lane.b32.xlu0 %v64, 64
    %v700 = vpop.permute.xlu0 %699
    %701 = vrot.lane.b32.xlu0 %v65, 64
    %v702 = vpop.permute.xlu0 %701
    %703 = vrot.lane.b32.xlu0 %v66, 64
    %v704 = vpop.permute.xlu0 %703
    %705 = vrot.lane.b32.xlu0 %v67, 64
    %v706 = vpop.permute.xlu0 %705
    %707 = vrot.lane.b32.xlu0 %v68, 64
    %v708 = vpop.permute.xlu0 %707
    %v725 = vadd.f32 %v469, %v678
    %v726 = vadd.f32 %v470, %v680
    %v727 = vadd.f32 %v471, %v682
    %v728 = vadd.f32 %v472, %v684
    %v729 = vadd.f32 %v473, %v686
    %v730 = vadd.f32 %v474, %v688
    %v731 = vadd.f32 %v475, %v690
    %v732 = vadd.f32 %v476, %v692
    %v733 = vadd.f32 %v477, %v694
    %v734 = vadd.f32 %v478, %v696
    %v735 = vadd.f32 %v479, %v698
    %v736 = vadd.f32 %v480, %v700
    %v737 = vadd.f32 %v481, %v702
    %v738 = vadd.f32 %v482, %v704
    %v739 = vadd.f32 %v483, %v706
    %v740 = vadd.f32 %v484, %v708
    %vm741 = vcmp.eq.s32.totalorder %v37, 3
    %vm742 = vcmp.eq.s32.totalorder %v38, 3
    %vm743 = vcmp.eq.s32.totalorder %v39, 3
    %vm744 = vcmp.eq.s32.totalorder %v40, 3
    %vm745 = vcmp.eq.s32.totalorder %v41, 3
    %vm746 = vcmp.eq.s32.totalorder %v42, 3
    %vm747 = vcmp.eq.s32.totalorder %v43, 3
    %vm748 = vcmp.eq.s32.totalorder %v44, 3
    %vm749 = vcmp.eq.s32.totalorder %v45, 3
    %vm750 = vcmp.eq.s32.totalorder %v46, 3
    %vm751 = vcmp.eq.s32.totalorder %v47, 3
    %vm752 = vcmp.eq.s32.totalorder %v48, 3
    %vm753 = vcmp.eq.s32.totalorder %v49, 3
    %vm754 = vcmp.eq.s32.totalorder %v50, 3
    %vm755 = vcmp.eq.s32.totalorder %v51, 3
    %vm756 = vcmp.eq.s32.totalorder %v52, 3
    %v757 = vsel %vm741, 1, 0
    %v758 = vsel %vm742, 1, 0
    %v759 = vsel %vm743, 1, 0
    %v760 = vsel %vm744, 1, 0
    %v761 = vsel %vm745, 1, 0
    %v762 = vsel %vm746, 1, 0
    %v763 = vsel %vm747, 1, 0
    %v764 = vsel %vm748, 1, 0
    %v765 = vsel %vm749, 1, 0
    %v766 = vsel %vm750, 1, 0
    %v767 = vsel %vm751, 1, 0
    %v768 = vsel %vm752, 1, 0
    %v769 = vsel %vm753, 1, 0
    %v770 = vsel %vm754, 1, 0
    %v771 = vsel %vm755, 1, 0
    %v772 = vsel %vm756, 1, 0
    %773 = vset.pattern.permute.xlu0 0
    %774 = vperm.xlu0 %773, %v757
    %v775 = vpop.permute.xlu0 %774
    %776 = vset.pattern.permute.xlu0 0
    %777 = vperm.xlu0 %776, %v758
    %v778 = vpop.permute.xlu0 %777
    %779 = vset.pattern.permute.xlu0 0
    %780 = vperm.xlu0 %779, %v759
    %v781 = vpop.permute.xlu0 %780
    %782 = vset.pattern.permute.xlu0 0
    %783 = vperm.xlu0 %782, %v760
    %v784 = vpop.permute.xlu0 %783
    %785 = vset.pattern.permute.xlu0 0
    %786 = vperm.xlu0 %785, %v761
    %v787 = vpop.permute.xlu0 %786
    %788 = vset.pattern.permute.xlu0 0
    %789 = vperm.xlu0 %788, %v762
    %v790 = vpop.permute.xlu0 %789
    %791 = vset.pattern.permute.xlu0 0
    %792 = vperm.xlu0 %791, %v763
    %v793 = vpop.permute.xlu0 %792
    %794 = vset.pattern.permute.xlu0 0
    %795 = vperm.xlu0 %794, %v764
    %v796 = vpop.permute.xlu0 %795
    %797 = vset.pattern.permute.xlu0 0
    %798 = vperm.xlu0 %797, %v765
    %v799 = vpop.permute.xlu0 %798
    %800 = vset.pattern.permute.xlu0 0
    %801 = vperm.xlu0 %800, %v766
    %v802 = vpop.permute.xlu0 %801
    %803 = vset.pattern.permute.xlu0 0
    %804 = vperm.xlu0 %803, %v767
    %v805 = vpop.permute.xlu0 %804
    %806 = vset.pattern.permute.xlu0 0
    %807 = vperm.xlu0 %806, %v768
    %v808 = vpop.permute.xlu0 %807
    %809 = vset.pattern.permute.xlu0 0
    %810 = vperm.xlu0 %809, %v769
    %v811 = vpop.permute.xlu0 %810
    %812 = vset.pattern.permute.xlu0 0
    %813 = vperm.xlu0 %812, %v770
    %v814 = vpop.permute.xlu0 %813
    %815 = vset.pattern.permute.xlu0 0
    %816 = vperm.xlu0 %815, %v771
    %v817 = vpop.permute.xlu0 %816
    %818 = vset.pattern.permute.xlu0 0
    %819 = vperm.xlu0 %818, %v772
    %v820 = vpop.permute.xlu0 %819
    %vm821 = vcmp.eq.s32.totalorder %v775, 1
    %vm822 = vcmp.eq.s32.totalorder %v778, 1
    %vm823 = vcmp.eq.s32.totalorder %v781, 1
    %vm824 = vcmp.eq.s32.totalorder %v784, 1
    %vm825 = vcmp.eq.s32.totalorder %v787, 1
    %vm826 = vcmp.eq.s32.totalorder %v790, 1
    %vm827 = vcmp.eq.s32.totalorder %v793, 1
    %vm828 = vcmp.eq.s32.totalorder %v796, 1
    %vm829 = vcmp.eq.s32.totalorder %v799, 1
    %vm830 = vcmp.eq.s32.totalorder %v802, 1
    %vm831 = vcmp.eq.s32.totalorder %v805, 1
    %vm832 = vcmp.eq.s32.totalorder %v808, 1
    %vm833 = vcmp.eq.s32.totalorder %v811, 1
    %vm834 = vcmp.eq.s32.totalorder %v814, 1
    %vm835 = vcmp.eq.s32.totalorder %v817, 1
    %vm836 = vcmp.eq.s32.totalorder %v820, 1
    %v837 = vsel %vm821, %v53, 0.0
    %v838 = vsel %vm822, %v54, 0.0
    %v839 = vsel %vm823, %v55, 0.0
    %v840 = vsel %vm824, %v56, 0.0
    %v841 = vsel %vm825, %v57, 0.0
    %v842 = vsel %vm826, %v58, 0.0
    %v843 = vsel %vm827, %v59, 0.0
    %v844 = vsel %vm828, %v60, 0.0
    %v845 = vsel %vm829, %v61, 0.0
    %v846 = vsel %vm830, %v62, 0.0
    %v847 = vsel %vm831, %v63, 0.0
    %v848 = vsel %vm832, %v64, 0.0
    %v849 = vsel %vm833, %v65, 0.0
    %v850 = vsel %vm834, %v66, 0.0
    %v851 = vsel %vm835, %v67, 0.0
    %v852 = vsel %vm836, %v68, 0.0
    %869 = vrot.lane.b32.xlu0 %v837, 32
    %v870 = vpop.permute.xlu0 %869
    %871 = vrot.lane.b32.xlu0 %v838, 32
    %v872 = vpop.permute.xlu0 %871
    %873 = vrot.lane.b32.xlu0 %v839, 32
    %v874 = vpop.permute.xlu0 %873
    %875 = vrot.lane.b32.xlu0 %v840, 32
    %v876 = vpop.permute.xlu0 %875
    %877 = vrot.lane.b32.xlu0 %v841, 32
    %v878 = vpop.permute.xlu0 %877
    %879 = vrot.lane.b32.xlu0 %v842, 32
    %v880 = vpop.permute.xlu0 %879
    %881 = vrot.lane.b32.xlu0 %v843, 32
    %v882 = vpop.permute.xlu0 %881
    %883 = vrot.lane.b32.xlu0 %v844, 32
    %v884 = vpop.permute.xlu0 %883
    %885 = vrot.lane.b32.xlu0 %v845, 32
    %v886 = vpop.permute.xlu0 %885
    %887 = vrot.lane.b32.xlu0 %v846, 32
    %v888 = vpop.permute.xlu0 %887
    %889 = vrot.lane.b32.xlu0 %v847, 32
    %v890 = vpop.permute.xlu0 %889
    %891 = vrot.lane.b32.xlu0 %v848, 32
    %v892 = vpop.permute.xlu0 %891
    %893 = vrot.lane.b32.xlu0 %v849, 32
    %v894 = vpop.permute.xlu0 %893
    %895 = vrot.lane.b32.xlu0 %v850, 32
    %v896 = vpop.permute.xlu0 %895
    %897 = vrot.lane.b32.xlu0 %v851, 32
    %v898 = vpop.permute.xlu0 %897
    %899 = vrot.lane.b32.xlu0 %v852, 32
    %v900 = vpop.permute.xlu0 %899
    %v917 = vadd.f32 %v661, %v870
    %v918 = vadd.f32 %v662, %v872
    %v919 = vadd.f32 %v663, %v874
    %v920 = vadd.f32 %v664, %v876
    %v921 = vadd.f32 %v665, %v878
    %v922 = vadd.f32 %v666, %v880
    %v923 = vadd.f32 %v667, %v882
    %v924 = vadd.f32 %v668, %v884
    %v925 = vadd.f32 %v669, %v886
    %v926 = vadd.f32 %v670, %v888
    %v927 = vadd.f32 %v671, %v890
    %v928 = vadd.f32 %v672, %v892
    %v929 = vadd.f32 %v673, %v894
    %v930 = vadd.f32 %v674, %v896
    %v931 = vadd.f32 %v675, %v898
    %v932 = vadd.f32 %v676, %v900
    %933 = vrot.lane.b32.xlu0 %v53, 32
    %v934 = vpop.permute.xlu0 %933
    %935 = vrot.lane.b32.xlu0 %v54, 32
    %v936 = vpop.permute.xlu0 %935
    %937 = vrot.lane.b32.xlu0 %v55, 32
    %v938 = vpop.permute.xlu0 %937
    %939 = vrot.lane.b32.xlu0 %v56, 32
    %v940 = vpop.permute.xlu0 %939
    %941 = vrot.lane.b32.xlu0 %v57, 32
    %v942 = vpop.permute.xlu0 %941
    %943 = vrot.lane.b32.xlu0 %v58, 32
    %v944 = vpop.permute.xlu0 %943
    %945 = vrot.lane.b32.xlu0 %v59, 32
    %v946 = vpop.permute.xlu0 %945
    %947 = vrot.lane.b32.xlu0 %v60, 32
    %v948 = vpop.permute.xlu0 %947
    %949 = vrot.lane.b32.xlu0 %v61, 32
    %v950 = vpop.permute.xlu0 %949
    %951 = vrot.lane.b32.xlu0 %v62, 32
    %v952 = vpop.permute.xlu0 %951
    %953 = vrot.lane.b32.xlu0 %v63, 32
    %v954 = vpop.permute.xlu0 %953
    %955 = vrot.lane.b32.xlu0 %v64, 32
    %v956 = vpop.permute.xlu0 %955
    %957 = vrot.lane.b32.xlu0 %v65, 32
    %v958 = vpop.permute.xlu0 %957
    %959 = vrot.lane.b32.xlu0 %v66, 32
    %v960 = vpop.permute.xlu0 %959
    %961 = vrot.lane.b32.xlu0 %v67, 32
    %v962 = vpop.permute.xlu0 %961
    %963 = vrot.lane.b32.xlu0 %v68, 32
    %v964 = vpop.permute.xlu0 %963
    %v981 = vadd.f32 %v725, %v934
    %v982 = vadd.f32 %v726, %v936
    %v983 = vadd.f32 %v727, %v938
    %v984 = vadd.f32 %v728, %v940
    %v985 = vadd.f32 %v729, %v942
    %v986 = vadd.f32 %v730, %v944
    %v987 = vadd.f32 %v731, %v946
    %v988 = vadd.f32 %v732, %v948
    %v989 = vadd.f32 %v733, %v950
    %v990 = vadd.f32 %v734, %v952
    %v991 = vadd.f32 %v735, %v954
    %v992 = vadd.f32 %v736, %v956
    %v993 = vadd.f32 %v737, %v958
    %v994 = vadd.f32 %v738, %v960
    %v995 = vadd.f32 %v739, %v962
    %v996 = vadd.f32 %v740, %v964
    %v997 = vld [vmem:[%s3] sm:$0xff]
    %v998 = vld [vmem:[%s3 + $0x8] sm:$0xff]
    %v999 = vld [vmem:[%s3 + $0x10] sm:$0xff]
    %v1000 = vld [vmem:[%s3 + $0x18] sm:$0xff]
    %v1001 = vld [vmem:[%s3 + $0x20] sm:$0xff]
    %v1002 = vld [vmem:[%s3 + $0x28] sm:$0xff]
    %v1003 = vld [vmem:[%s3 + $0x30] sm:$0xff]
    %v1004 = vld [vmem:[%s3 + $0x38] sm:$0xff]
    %v1005 = vld [vmem:[%s3 + $0x40] sm:$0xff]
    %v1006 = vld [vmem:[%s3 + $0x48] sm:$0xff]
    %v1007 = vld [vmem:[%s3 + $0x50] sm:$0xff]
    %v1008 = vld [vmem:[%s3 + $0x58] sm:$0xff]
    %v1009 = vld [vmem:[%s3 + $0x60] sm:$0xff]
    %v1010 = vld [vmem:[%s3 + $0x68] sm:$0xff]
    %v1011 = vld [vmem:[%s3 + $0x70] sm:$0xff]
    %v1012 = vld [vmem:[%s3 + $0x78] sm:$0xff]
    %1014 = vset.pattern.permute.xlu0 0
    %1015 = vperm.xlu0 %1014, %v997
    %v1016 = vpop.permute.xlu0 %1015
    %1019 = vset.pattern.permute.xlu0 0
    %1020 = vperm.xlu0 %1019, %v998
    %v1021 = vpop.permute.xlu0 %1020
    %1024 = vset.pattern.permute.xlu0 0
    %1025 = vperm.xlu0 %1024, %v999
    %v1026 = vpop.permute.xlu0 %1025
    %1029 = vset.pattern.permute.xlu0 0
    %1030 = vperm.xlu0 %1029, %v1000
    %v1031 = vpop.permute.xlu0 %1030
    %1034 = vset.pattern.permute.xlu0 0
    %1035 = vperm.xlu0 %1034, %v1001
    %v1036 = vpop.permute.xlu0 %1035
    %1039 = vset.pattern.permute.xlu0 0
    %1040 = vperm.xlu0 %1039, %v1002
    %v1041 = vpop.permute.xlu0 %1040
    %1044 = vset.pattern.permute.xlu0 0
    %1045 = vperm.xlu0 %1044, %v1003
    %v1046 = vpop.permute.xlu0 %1045
    %1049 = vset.pattern.permute.xlu0 0
    %1050 = vperm.xlu0 %1049, %v1004
    %v1051 = vpop.permute.xlu0 %1050
    %1054 = vset.pattern.permute.xlu0 0
    %1055 = vperm.xlu0 %1054, %v1005
    %v1056 = vpop.permute.xlu0 %1055
    %1059 = vset.pattern.permute.xlu0 0
    %1060 = vperm.xlu0 %1059, %v1006
    %v1061 = vpop.permute.xlu0 %1060
    %1064 = vset.pattern.permute.xlu0 0
    %1065 = vperm.xlu0 %1064, %v1007
    %v1066 = vpop.permute.xlu0 %1065
    %1069 = vset.pattern.permute.xlu0 0
    %1070 = vperm.xlu0 %1069, %v1008
    %v1071 = vpop.permute.xlu0 %1070
    %1074 = vset.pattern.permute.xlu0 0
    %1075 = vperm.xlu0 %1074, %v1009
    %v1076 = vpop.permute.xlu0 %1075
    %1079 = vset.pattern.permute.xlu0 0
    %1080 = vperm.xlu0 %1079, %v1010
    %v1081 = vpop.permute.xlu0 %1080
    %1084 = vset.pattern.permute.xlu0 0
    %1085 = vperm.xlu0 %1084, %v1011
    %v1086 = vpop.permute.xlu0 %1085
    %1089 = vset.pattern.permute.xlu0 0
    %1090 = vperm.xlu0 %1089, %v1012
    %v1091 = vpop.permute.xlu0 %1090
    %v1093 = vmul.f32 %v981, %v1016
    %v1094 = vmul.f32 %v982, %v1021
    %v1095 = vmul.f32 %v983, %v1026
    %v1096 = vmul.f32 %v984, %v1031
    %v1097 = vmul.f32 %v985, %v1036
    %v1098 = vmul.f32 %v986, %v1041
    %v1099 = vmul.f32 %v987, %v1046
    %v1100 = vmul.f32 %v988, %v1051
    %v1101 = vmul.f32 %v989, %v1056
    %v1102 = vmul.f32 %v990, %v1061
    %v1103 = vmul.f32 %v991, %v1066
    %v1104 = vmul.f32 %v992, %v1071
    %v1105 = vmul.f32 %v993, %v1076
    %v1106 = vmul.f32 %v994, %v1081
    %v1107 = vmul.f32 %v995, %v1086
    %v1108 = vmul.f32 %v996, %v1091
    %s1109 = smul.u32 0, 128
    %v1110 = vlaneseq
    %v1111 = vshrl.u32 %v1110, 7
    %v1112 = vadd.s32 %v1111, 8
    %v1113 = vadd.s32 %v1111, 16
    %v1114 = vadd.s32 %v1111, 24
    %v1115 = vadd.s32 %v1111, 32
    %v1116 = vadd.s32 %v1111, 40
    %v1117 = vadd.s32 %v1111, 48
    %v1118 = vadd.s32 %v1111, 56
    %v1119 = vadd.s32 %v1111, 64
    %v1120 = vadd.s32 %v1111, 72
    %v1121 = vadd.s32 %v1111, 80
    %v1122 = vadd.s32 %v1111, 88
    %v1123 = vadd.s32 %v1111, 96
    %v1124 = vadd.s32 %v1111, 104
    %v1125 = vadd.s32 %v1111, 112
    %v1126 = vadd.s32 %v1111, 120
    %v1127 = vstv %s1109
    %v1128 = vadd.s32 %v1127, %v1111
    %v1129 = vadd.s32 %v1127, %v1112
    %v1130 = vadd.s32 %v1127, %v1113
    %v1131 = vadd.s32 %v1127, %v1114
    %v1132 = vadd.s32 %v1127, %v1115
    %v1133 = vadd.s32 %v1127, %v1116
    %v1134 = vadd.s32 %v1127, %v1117
    %v1135 = vadd.s32 %v1127, %v1118
    %v1136 = vadd.s32 %v1127, %v1119
    %v1137 = vadd.s32 %v1127, %v1120
    %v1138 = vadd.s32 %v1127, %v1121
    %v1139 = vadd.s32 %v1127, %v1122
    %v1140 = vadd.s32 %v1127, %v1123
    %v1141 = vadd.s32 %v1127, %v1124
    %v1142 = vadd.s32 %v1127, %v1125
    %v1143 = vadd.s32 %v1127, %v1126
    %vm1144 = vcmp.lt.s32.totalorder %v1128, 8
    %vm1145 = vcmp.lt.s32.totalorder %v1129, 8
    %vm1146 = vcmp.lt.s32.totalorder %v1130, 8
    %vm1147 = vcmp.lt.s32.totalorder %v1131, 8
    %vm1148 = vcmp.lt.s32.totalorder %v1132, 8
    %vm1149 = vcmp.lt.s32.totalorder %v1133, 8
    %vm1150 = vcmp.lt.s32.totalorder %v1134, 8
    %vm1151 = vcmp.lt.s32.totalorder %v1135, 8
    %vm1152 = vcmp.lt.s32.totalorder %v1136, 8
    %vm1153 = vcmp.lt.s32.totalorder %v1137, 8
    %vm1154 = vcmp.lt.s32.totalorder %v1138, 8
    %vm1155 = vcmp.lt.s32.totalorder %v1139, 8
    %vm1156 = vcmp.lt.s32.totalorder %v1140, 8
    %vm1157 = vcmp.lt.s32.totalorder %v1141, 8
    %vm1158 = vcmp.lt.s32.totalorder %v1142, 8
    %vm1159 = vcmp.lt.s32.totalorder %v1143, 8
    %v1160 = vsel %vm1144, 1, 0
    %v1161 = vsel %vm1145, 1, 0
    %v1162 = vsel %vm1146, 1, 0
    %v1163 = vsel %vm1147, 1, 0
    %v1164 = vsel %vm1148, 1, 0
    %v1165 = vsel %vm1149, 1, 0
    %v1166 = vsel %vm1150, 1, 0
    %v1167 = vsel %vm1151, 1, 0
    %v1168 = vsel %vm1152, 1, 0
    %v1169 = vsel %vm1153, 1, 0
    %v1170 = vsel %vm1154, 1, 0
    %v1171 = vsel %vm1155, 1, 0
    %v1172 = vsel %vm1156, 1, 0
    %v1173 = vsel %vm1157, 1, 0
    %v1174 = vsel %vm1158, 1, 0
    %v1175 = vsel %vm1159, 1, 0
    %vm1176 = vcmp.eq.s32.totalorder %v1160, 1
    %vm1177 = vcmp.eq.s32.totalorder %v1161, 1
    %vm1178 = vcmp.eq.s32.totalorder %v1162, 1
    %vm1179 = vcmp.eq.s32.totalorder %v1163, 1
    %vm1180 = vcmp.eq.s32.totalorder %v1164, 1
    %vm1181 = vcmp.eq.s32.totalorder %v1165, 1
    %vm1182 = vcmp.eq.s32.totalorder %v1166, 1
    %vm1183 = vcmp.eq.s32.totalorder %v1167, 1
    %vm1184 = vcmp.eq.s32.totalorder %v1168, 1
    %vm1185 = vcmp.eq.s32.totalorder %v1169, 1
    %vm1186 = vcmp.eq.s32.totalorder %v1170, 1
    %vm1187 = vcmp.eq.s32.totalorder %v1171, 1
    %vm1188 = vcmp.eq.s32.totalorder %v1172, 1
    %vm1189 = vcmp.eq.s32.totalorder %v1173, 1
    %vm1190 = vcmp.eq.s32.totalorder %v1174, 1
    %vm1191 = vcmp.eq.s32.totalorder %v1175, 1
    %v1192 = vsel %vm1176, %v917, 0.0
    %v1193 = vsel %vm1177, %v918, 0.0
    %v1194 = vsel %vm1178, %v919, 0.0
    %v1195 = vsel %vm1179, %v920, 0.0
    %v1196 = vsel %vm1180, %v921, 0.0
    %v1197 = vsel %vm1181, %v922, 0.0
    %v1198 = vsel %vm1182, %v923, 0.0
    %v1199 = vsel %vm1183, %v924, 0.0
    %v1200 = vsel %vm1184, %v925, 0.0
    %v1201 = vsel %vm1185, %v926, 0.0
    %v1202 = vsel %vm1186, %v927, 0.0
    %v1203 = vsel %vm1187, %v928, 0.0
    %v1204 = vsel %vm1188, %v929, 0.0
    %v1205 = vsel %vm1189, %v930, 0.0
    %v1206 = vsel %vm1190, %v931, 0.0
    %v1207 = vsel %vm1191, %v932, 0.0
    %v1208 = vsel %vm1176, %v1093, 0.0
    %v1209 = vsel %vm1177, %v1094, 0.0
    %v1210 = vsel %vm1178, %v1095, 0.0
    %v1211 = vsel %vm1179, %v1096, 0.0
    %v1212 = vsel %vm1180, %v1097, 0.0
    %v1213 = vsel %vm1181, %v1098, 0.0
    %v1214 = vsel %vm1182, %v1099, 0.0
    %v1215 = vsel %vm1183, %v1100, 0.0
    %v1216 = vsel %vm1184, %v1101, 0.0
    %v1217 = vsel %vm1185, %v1102, 0.0
    %v1218 = vsel %vm1186, %v1103, 0.0
    %v1219 = vsel %vm1187, %v1104, 0.0
    %v1220 = vsel %vm1188, %v1105, 0.0
    %v1221 = vsel %vm1189, %v1106, 0.0
    %v1222 = vsel %vm1190, %v1107, 0.0
    %v1223 = vsel %vm1191, %v1108, 0.0
    %v1224 = vld [vmem:[%s2] sm:$0x1]
    %v1225 = vlaneseq
    %v1226 = vshrl.u32 %v1225, 7
    %v1227 = vsub.s32 0, %v1226
    %v1228 = vrot.slane %v1224, %v1227
    %vm1229 = vcmp.eq.s32.totalorder %v1111, %v1228
    %v1230 = vsel %vm1229, 1, 0
    %v1231 = vcvt.s32.f32 %v1230
    %v1232 = vld [vmem:[#allocation2] sm:$0xff]
    %1233 = vmatprep.subr.mxu0 0.0
    %1234 = vmatpush1.msra.mxu0 %v1192
    %1235 = vmatprep.subr.mxu0 0.0
    %1236 = vmatpush1.msra.mxu0 %v1193
    %1237 = vmatprep.subr.mxu0 0.0
    %1238 = vmatpush1.msra.mxu0 %v1194
    %1239 = vmatprep.subr.mxu0 0.0
    %1240 = vmatpush1.msra.mxu0 %v1195
    %1241 = vmatprep.subr.mxu0 0.0
    %1242 = vmatpush1.msra.mxu0 %v1196
    %1243 = vmatprep.subr.mxu0 0.0
    %1244 = vmatpush1.msra.mxu0 %v1197
    %1245 = vmatprep.subr.mxu0 0.0
    %1246 = vmatpush1.msra.mxu0 %v1198
    %1247 = vmatprep.subr.mxu0 0.0
    %1248 = vmatpush1.msra.mxu0 %v1199
    %1249 = vmatprep.subr.mxu0 0.0
    %1250 = vmatpush1.msra.mxu0 %v1200
    %1251 = vmatprep.subr.mxu0 0.0
    %1252 = vmatpush1.msra.mxu0 %v1201
    %1253 = vmatprep.subr.mxu0 0.0
    %1254 = vmatpush1.msra.mxu0 %v1202
    %1255 = vmatprep.subr.mxu0 0.0
    %1256 = vmatpush1.msra.mxu0 %v1203
    %1257 = vmatprep.subr.mxu0 0.0
    %1258 = vmatpush1.msra.mxu0 %v1204
    %1259 = vmatprep.subr.mxu0 0.0
    %1260 = vmatpush1.msra.mxu0 %v1205
    %1261 = vmatprep.subr.mxu0 0.0
    %1262 = vmatpush1.msra.mxu0 %v1206
    %1263 = vmatprep.subr.mxu0 0.0
    %1264 = vmatpush1.msra.mxu0 %v1207
    %1265 = vmatprep.subr.mxu0 0.0
    %1266 = vmatpush1.msra.mxu0 0.0
    %1267 = vmatprep.subr.mxu0 0.0
    %1268 = vmatpush1.msra.mxu0 0.0
    %1269 = vmatprep.subr.mxu0 0.0
    %1270 = vmatpush1.msra.mxu0 0.0
    %1271 = vmatprep.subr.mxu0 0.0
    %1272 = vmatpush1.msra.mxu0 0.0
    %1273 = vmatprep.subr.mxu0 0.0
    %1274 = vmatpush1.msra.mxu0 0.0
    %1275 = vmatprep.subr.mxu0 0.0
    %1276 = vmatpush1.msra.mxu0 0.0
    %1277 = vmatprep.subr.mxu0 0.0
    %1278 = vmatpush1.msra.mxu0 0.0
    %1279 = vmatprep.subr.mxu0 0.0
    %1280 = vmatpush1.msra.mxu0 0.0
    %1281 = vmatprep.subr.mxu0 0.0
    %1282 = vmatpush1.msra.mxu0 0.0
    %1283 = vmatprep.subr.mxu0 0.0
    %1284 = vmatpush1.msra.mxu0 0.0
    %1285 = vmatprep.subr.mxu0 0.0
    %1286 = vmatpush1.msra.mxu0 0.0
    %1287 = vmatprep.subr.mxu0 0.0
    %1288 = vmatpush1.msra.mxu0 0.0
    %1289 = vmatprep.subr.mxu0 0.0
    %1290 = vmatpush1.msra.mxu0 0.0
    %1291 = vmatprep.subr.mxu0 0.0
    %1292 = vmatpush1.msra.mxu0 0.0
    %1293 = vmatprep.subr.mxu0 0.0
    %1294 = vmatpush1.msra.mxu0 0.0
    %1295 = vmatprep.subr.mxu0 0.0
    %1296 = vmatpush1.msra.mxu0 0.0
    %1297 = vmatprep.mubr.f32.mxu0 0.0
    %1298 = vmatmul.mubr.f32.gmra.mrb[0].mxu0 %v1231
    %v1299 = vpop.f32.mrb[0].mxu0
    %v1300 = vadd.f32 0.0, %v1299
    %v1301 = vpop.f32.mrb[0].mxu0
    %1302 = vdwg.mxu0
    %v1303 = vadd.f32 %v1232, %v1300
    %vm1304 = vcmask 261120
    %1305 = vst.msk [vmem:[#allocation2] sm:$0xff] %vm1304, %v1303
    %v1306 = vld [vmem:[#allocation3] sm:$0xff]
    %1307 = vmatprep.subr.mxu0 0.0
    %1308 = vmatpush1.msra.mxu0 %v1208
    %1309 = vmatprep.subr.mxu0 0.0
    %1310 = vmatpush1.msra.mxu0 %v1209
    %1311 = vmatprep.subr.mxu0 0.0
    %1312 = vmatpush1.msra.mxu0 %v1210
    %1313 = vmatprep.subr.mxu0 0.0
    %1314 = vmatpush1.msra.mxu0 %v1211
    %1315 = vmatprep.subr.mxu0 0.0
    %1316 = vmatpush1.msra.mxu0 %v1212
    %1317 = vmatprep.subr.mxu0 0.0
    %1318 = vmatpush1.msra.mxu0 %v1213
    %1319 = vmatprep.subr.mxu0 0.0
    %1320 = vmatpush1.msra.mxu0 %v1214
    %1321 = vmatprep.subr.mxu0 0.0
    %1322 = vmatpush1.msra.mxu0 %v1215
    %1323 = vmatprep.subr.mxu0 0.0
    %1324 = vmatpush1.msra.mxu0 %v1216
    %1325 = vmatprep.subr.mxu0 0.0
    %1326 = vmatpush1.msra.mxu0 %v1217
    %1327 = vmatprep.subr.mxu0 0.0
    %1328 = vmatpush1.msra.mxu0 %v1218
    %1329 = vmatprep.subr.mxu0 0.0
    %1330 = vmatpush1.msra.mxu0 %v1219
    %1331 = vmatprep.subr.mxu0 0.0
    %1332 = vmatpush1.msra.mxu0 %v1220
    %1333 = vmatprep.subr.mxu0 0.0
    %1334 = vmatpush1.msra.mxu0 %v1221
    %1335 = vmatprep.subr.mxu0 0.0
    %1336 = vmatpush1.msra.mxu0 %v1222
    %1337 = vmatprep.subr.mxu0 0.0
    %1338 = vmatpush1.msra.mxu0 %v1223
    %1339 = vmatprep.subr.mxu0 0.0
    %1340 = vmatpush1.msra.mxu0 0.0
    %1341 = vmatprep.subr.mxu0 0.0
    %1342 = vmatpush1.msra.mxu0 0.0
    %1343 = vmatprep.subr.mxu0 0.0
    %1344 = vmatpush1.msra.mxu0 0.0
    %1345 = vmatprep.subr.mxu0 0.0
    %1346 = vmatpush1.msra.mxu0 0.0
    %1347 = vmatprep.subr.mxu0 0.0
    %1348 = vmatpush1.msra.mxu0 0.0
    %1349 = vmatprep.subr.mxu0 0.0
    %1350 = vmatpush1.msra.mxu0 0.0
    %1351 = vmatprep.subr.mxu0 0.0
    %1352 = vmatpush1.msra.mxu0 0.0
    %1353 = vmatprep.subr.mxu0 0.0
    %1354 = vmatpush1.msra.mxu0 0.0
    %1355 = vmatprep.subr.mxu0 0.0
    %1356 = vmatpush1.msra.mxu0 0.0
    %1357 = vmatprep.subr.mxu0 0.0
    %1358 = vmatpush1.msra.mxu0 0.0
    %1359 = vmatprep.subr.mxu0 0.0
    %1360 = vmatpush1.msra.mxu0 0.0
    %1361 = vmatprep.subr.mxu0 0.0
    %1362 = vmatpush1.msra.mxu0 0.0
    %1363 = vmatprep.subr.mxu0 0.0
    %1364 = vmatpush1.msra.mxu0 0.0
    %1365 = vmatprep.subr.mxu0 0.0
    %1366 = vmatpush1.msra.mxu0 0.0
    %1367 = vmatprep.subr.mxu0 0.0
    %1368 = vmatpush1.msra.mxu0 0.0
    %1369 = vmatprep.subr.mxu0 0.0
    %1370 = vmatpush1.msra.mxu0 0.0
    %1371 = vmatprep.mubr.f32.mxu0 0.0
    %1372 = vmatmul.mubr.f32.gmra.mrb[0].mxu0 %v1231
    %v1373 = vpop.f32.mrb[0].mxu0
    %v1374 = vadd.f32 0.0, %v1373
    %v1375 = vpop.f32.mrb[0].mxu0
    %1376 = vdwg.mxu0
    %v1377 = vadd.f32 %v1306, %v1374
    %1378 = vst.msk [vmem:[#allocation3] sm:$0xff] %vm1304, %v1377
    // Predicated region
    $region38: #{tpu_custom_call.1} parent=1 // pred_check
      %p1379 = pneg %p30
    $region39: #{tpu_custom_call.1} parent=1 // pred_check_branch
      %1381 = sbr.rel (%p1379) target = $region41
    $region40: #{tpu_custom_call.1} parent=1 // pred_region
      %v1382 = vld [vmem:[%s4] sm:$0xff]
      %v1383 = vld [vmem:[#allocation2] sm:$0xff]
      %1385 = vset.pattern.permute.xlu0 0
      %1386 = vperm.xlu0 %1385, %v1382
      %v1387 = vpop.permute.xlu0 %1386
      %v1389 = vmul.f32 %v1383, %v1387
      %v1390 = vld [vmem:[#allocation3] sm:$0xff]
      %v1391 = vmul.f32 %v1390, %v1387
      %v1392 = vld [vmem:[%s5] sm:$0xff]
      %v1393 = vld [vmem:[%s5 + $0x8] sm:$0xff]
      %v1394 = vld [vmem:[%s5 + $0x10] sm:$0xff]
      %v1395 = vld [vmem:[%s5 + $0x18] sm:$0xff]
      %v1396 = vld [vmem:[%s6] sm:$0xff]
      %v1397 = vld [vmem:[%s6 + $0x8] sm:$0xff]
      %v1398 = vld [vmem:[%s6 + $0x10] sm:$0xff]
      %v1399 = vld [vmem:[%s6 + $0x18] sm:$0xff]
      %v1401 = vsel %vm1304, %v1391, 0
      %1403 = vmatprep.subr.mxu0 0.0
      %1404 = vmatpush1.msra.mxu0 %v1396
      %1405 = vmatprep.subr.mxu0 0.0
      %1406 = vmatpush1.msra.mxu0 %v1397
      %1407 = vmatprep.subr.mxu0 0.0
      %1408 = vmatpush1.msra.mxu0 %v1398
      %1409 = vmatprep.subr.mxu0 0.0
      %1410 = vmatpush1.msra.mxu0 %v1399
      %1411 = vmatprep.subr.mxu0 0.0
      %1412 = vmatpush1.msra.mxu0 0.0
      %1413 = vmatprep.subr.mxu0 0.0
      %1414 = vmatpush1.msra.mxu0 0.0
      %1415 = vmatprep.subr.mxu0 0.0
      %1416 = vmatpush1.msra.mxu0 0.0
      %1417 = vmatprep.subr.mxu0 0.0
      %1418 = vmatpush1.msra.mxu0 0.0
      %1419 = vmatprep.subr.mxu0 0.0
      %1420 = vmatpush1.msra.mxu0 0.0
      %1421 = vmatprep.subr.mxu0 0.0
      %1422 = vmatpush1.msra.mxu0 0.0
      %1423 = vmatprep.subr.mxu0 0.0
      %1424 = vmatpush1.msra.mxu0 0.0
      %1425 = vmatprep.subr.mxu0 0.0
      %1426 = vmatpush1.msra.mxu0 0.0
      %1427 = vmatprep.subr.mxu0 0.0
      %1428 = vmatpush1.msra.mxu0 0.0
      %1429 = vmatprep.subr.mxu0 0.0
      %1430 = vmatpush1.msra.mxu0 0.0
      %1431 = vmatprep.subr.mxu0 0.0
      %1432 = vmatpush1.msra.mxu0 0.0
      %1433 = vmatprep.subr.mxu0 0.0
      %1434 = vmatpush1.msra.mxu0 0.0
      %1435 = vmatprep.subr.mxu0 0.0
      %1436 = vmatpush1.msra.mxu0 0.0
      %1437 = vmatprep.subr.mxu0 0.0
      %1438 = vmatpush1.msra.mxu0 0.0
      %1439 = vmatprep.subr.mxu0 0.0
      %1440 = vmatpush1.msra.mxu0 0.0
      %1441 = vmatprep.subr.mxu0 0.0
      %1442 = vmatpush1.msra.mxu0 0.0
      %1443 = vmatprep.subr.mxu0 0.0
      %1444 = vmatpush1.msra.mxu0 0.0
      %1445 = vmatprep.subr.mxu0 0.0
      %1446 = vmatpush1.msra.mxu0 0.0
      %1447 = vmatprep.subr.mxu0 0.0
      %1448 = vmatpush1.msra.mxu0 0.0
      %1449 = vmatprep.subr.mxu0 0.0
      %1450 = vmatpush1.msra.mxu0 0.0
      %1451 = vmatprep.subr.mxu0 0.0
      %1452 = vmatpush1.msra.mxu0 0.0
      %1453 = vmatprep.subr.mxu0 0.0
      %1454 = vmatpush1.msra.mxu0 0.0
      %1455 = vmatprep.subr.mxu0 0.0
      %1456 = vmatpush1.msra.mxu0 0.0
      %1457 = vmatprep.subr.mxu0 0.0
      %1458 = vmatpush1.msra.mxu0 0.0
      %1459 = vmatprep.subr.mxu0 0.0
      %1460 = vmatpush1.msra.mxu0 0.0
      %1461 = vmatprep.subr.mxu0 0.0
      %1462 = vmatpush1.msra.mxu0 0.0
      %1463 = vmatprep.subr.mxu0 0.0
      %1464 = vmatpush1.msra.mxu0 0.0
      %1465 = vmatprep.subr.mxu0 0.0
      %1466 = vmatpush1.msra.mxu0 0.0
      %1467 = vmatprep.mubr.f32.mxu0 0.0
      %1468 = vmatmul.mubr.f32.gmra.mrb[0].mxu0 %v1401
      %v1469 = vpop.f32.mrb[0].mxu0
      %v1470 = vadd.f32 0.0, %v1469
      %v1471 = vpop.f32.mrb[0].mxu0
      %1472 = vdwg.mxu0
      %v1474 = vsel %vm1304, %v1389, 0
      %1476 = vmatprep.subr.mxu0 0.0
      %1477 = vmatpush1.msra.mxu0 %v1392
      %1478 = vmatprep.subr.mxu0 0.0
      %1479 = vmatpush1.msra.mxu0 %v1393
      %1480 = vmatprep.subr.mxu0 0.0
      %1481 = vmatpush1.msra.mxu0 %v1394
      %1482 = vmatprep.subr.mxu0 0.0
      %1483 = vmatpush1.msra.mxu0 %v1395
      %1484 = vmatprep.subr.mxu0 0.0
      %1485 = vmatpush1.msra.mxu0 0.0
      %1486 = vmatprep.subr.mxu0 0.0
      %1487 = vmatpush1.msra.mxu0 0.0
      %1488 = vmatprep.subr.mxu0 0.0
      %1489 = vmatpush1.msra.mxu0 0.0
      %1490 = vmatprep.subr.mxu0 0.0
      %1491 = vmatpush1.msra.mxu0 0.0
      %1492 = vmatprep.subr.mxu0 0.0
      %1493 = vmatpush1.msra.mxu0 0.0
      %1494 = vmatprep.subr.mxu0 0.0
      %1495 = vmatpush1.msra.mxu0 0.0
      %1496 = vmatprep.subr.mxu0 0.0
      %1497 = vmatpush1.msra.mxu0 0.0
      %1498 = vmatprep.subr.mxu0 0.0
      %1499 = vmatpush1.msra.mxu0 0.0
      %1500 = vmatprep.subr.mxu0 0.0
      %1501 = vmatpush1.msra.mxu0 0.0
      %1502 = vmatprep.subr.mxu0 0.0
      %1503 = vmatpush1.msra.mxu0 0.0
      %1504 = vmatprep.subr.mxu0 0.0
      %1505 = vmatpush1.msra.mxu0 0.0
      %1506 = vmatprep.subr.mxu0 0.0
      %1507 = vmatpush1.msra.mxu0 0.0
      %1508 = vmatprep.subr.mxu0 0.0
      %1509 = vmatpush1.msra.mxu0 0.0
      %1510 = vmatprep.subr.mxu0 0.0
      %1511 = vmatpush1.msra.mxu0 0.0
      %1512 = vmatprep.subr.mxu0 0.0
      %1513 = vmatpush1.msra.mxu0 0.0
      %1514 = vmatprep.subr.mxu0 0.0
      %1515 = vmatpush1.msra.mxu0 0.0
      %1516 = vmatprep.subr.mxu0 0.0
      %1517 = vmatpush1.msra.mxu0 0.0
      %1518 = vmatprep.subr.mxu0 0.0
      %1519 = vmatpush1.msra.mxu0 0.0
      %1520 = vmatprep.subr.mxu0 0.0
      %1521 = vmatpush1.msra.mxu0 0.0
      %1522 = vmatprep.subr.mxu0 0.0
      %1523 = vmatpush1.msra.mxu0 0.0
      %1524 = vmatprep.subr.mxu0 0.0
      %1525 = vmatpush1.msra.mxu0 0.0
      %1526 = vmatprep.subr.mxu0 0.0
      %1527 = vmatpush1.msra.mxu0 0.0
      %1528 = vmatprep.subr.mxu0 0.0
      %1529 = vmatpush1.msra.mxu0 0.0
      %1530 = vmatprep.subr.mxu0 0.0
      %1531 = vmatpush1.msra.mxu0 0.0
      %1532 = vmatprep.subr.mxu0 0.0
      %1533 = vmatpush1.msra.mxu0 0.0
      %1534 = vmatprep.subr.mxu0 0.0
      %1535 = vmatpush1.msra.mxu0 0.0
      %1536 = vmatprep.subr.mxu0 0.0
      %1537 = vmatpush1.msra.mxu0 0.0
      %1538 = vmatprep.subr.mxu0 0.0
      %1539 = vmatpush1.msra.mxu0 0.0
      %1540 = vmatprep.mubr.f32.mxu0 0.0
      %1541 = vmatmul.mubr.f32.gmra.mrb[0].mxu0 %v1474
      %v1542 = vpop.f32.mrb[0].mxu0
      %v1543 = vadd.f32 %v1470, %v1542
      %v1544 = vpop.f32.mrb[0].mxu0
      %1545 = vdwg.mxu0
      %v1546 = vld [vmem:[%s7] sm:$0x1]
      %v1548 = vlaneseq
      %v1549 = vshrl.u32 %v1548, 7
      %v1550 = vsub.s32 0, %v1549
      %v1551 = vrot.slane %v1546, %v1550
      %v1553 = vadd.f32 %v1543, %v1551
      %1554 = vst [vmem:[#allocation4] sm:$0xff] %v1553
    $region41: #{tpu_custom_call.1} parent=1 // pred_fallthru
      _
    // Predicated region
    $region42: #{tpu_custom_call.1} parent=1 // pred_check
      _
    $region43: #{tpu_custom_call.1} parent=1 // pred_check_branch
      %1556 = sbr.rel (0) target = $region45
    $region44: #{tpu_custom_call.1} parent=1 // pred_region
      %s1558 = ssub.s32 128, 128
      %1559 = vsyncadd [#allocation5], %s1558
      %s1561 = sshll.u32 [#allocation4], 4
      %s1562 = int_to_ptr.vmem [resolvable:$true] %s1561
      %1564 = dma.vmem_to_hbm [thread:$0]  %s1562, 128, %s8, [#allocation5]
    $region45: #{tpu_custom_call.1} parent=1 // pred_fallthru
      _
    // Predicated region
    $region46: #{tpu_custom_call.1} parent=1 // pred_check
      _
    $region47: #{tpu_custom_call.1} parent=1 // pred_check_branch
      %1566 = sbr.rel (0) target = $region49
    $region48: #{tpu_custom_call.1} parent=1 // pred_region
      %1567 = dma.done [#allocation5], 128
    $region49: #{tpu_custom_call.1} parent=1 // pred_fallthru
      _
    %1568 = vsyncpa [#allocation5], 1

</llo_original>
